<compile_context>
chip_gen: v7x
topology: tpu7x:2x2x1
jax: 0.10.0
libtpu: 0.0.40
codegen_flags: <defaults>
</compile_context>

<pallas_src>
import functools

import numpy as np
import jax
import jax.numpy as jnp
from jax import lax
from jax.experimental import pallas as pl
from jax.experimental.pallas import tpu as pltpu

_SELU_ALPHA = 1.6732632423543772848170429916717
_SELU_SCALE = 1.0507009873554804934193349852946


# -----------------------------------------------------------------------------
# Fused Pallas kernel: gates (Fire1 + SELU + Fire2) + pooling + InstanceNorm + AdaIN
# -----------------------------------------------------------------------------
def _fused_adain_kernel(x_ref, zp_ref, pm_ref,
                        w1s_ref, b1s_ref, w1e_ref, b1e_ref,
                        w2s_ref, b2s_ref, w2e_ref, b2e_ref,
                        o_ref, *, wp):
    """One grid step = NB batch elements.

    Gate tensors live as (channels, NB*Hp*Wp): channels on sublanes and
    (batch x padded spatial) flattened onto lanes (lane dense).  x / out are
    handled as a lane-dense (NB*C, HW) slab.
    """
    nb, c, hw = x_ref.shape
    _, _, L = zp_ref.shape                       # L = NB * Hp * Wp

    def shift(a, k):
        # Bring the value at lane p+k to lane p.  Wrapped lanes (and any lane that
        # crosses a batch sub-block) only ever land on spatially-invalid positions,
        # which the pooling mask zeroes out.  (pltpu.roll would also work; the
        # concat-of-slices lowering is the proven-safe path for these shapes.)
        if k == 0:
            return a
        return jnp.concatenate([a[:, k:], a[:, :k]], axis=1)

    def fire_expand(act, w_taps_ref, b_ref):
        # 3x3 expand as 9 accumulate matmuls on lane-shifted views; the fused 1x1
        # expand occupies the centre tap of the stacked weights.  Shifts ride the
        # XLU slot, matmuls the MXU slot -> they overlap in the VLIW bundle.
        w = w_taps_ref[...]                                    # (9, Eo, Si) bf16
        acc = jnp.zeros((w.shape[1], L), jnp.float32)
        for dy in range(3):
            for dx in range(3):
                sh = shift(act, dy * wp + dx).astype(jnp.bfloat16)
                acc = acc + jnp.dot(w[dy * 3 + dx], sh,
                                    preferred_element_type=jnp.float32)
        return jnp.maximum(acc + b_ref[...], 0.0)

    # ---------------- gate path (mul_gate & add_gate fused along channels) --------
    z = zp_ref[0].astype(jnp.bfloat16)                         # (Cz, L)

    # Fire1 squeeze (1x1 conv == matmul) + ReLU
    sq1 = jnp.dot(w1s_ref[...], z, preferred_element_type=jnp.float32) + b1s_ref[...]
    sq1 = jnp.maximum(sq1, 0.0)

    # Fire1 expand (+ReLU), then SELU; Dropout(0.25) is identity in eval mode
    h1 = fire_expand(sq1, w1e_ref, b1e_ref)
    h1 = _SELU_SCALE * jnp.where(
        h1 > 0.0, h1, _SELU_ALPHA * (jnp.exp(jnp.minimum(h1, 0.0)) - 1.0))

    # Fire2 squeeze (block-diagonal fused weight) + ReLU, then Fire2 expand (+ReLU)
    sq2 = jnp.dot(w2s_ref[...], h1.astype(jnp.bfloat16),
                  preferred_element_type=jnp.float32) + b2s_ref[...]
    sq2 = jnp.maximum(sq2, 0.0)
    g = fire_expand(sq2, w2e_ref, b2e_ref)                     # (2C, L): [mul | add]

    # Masked global average pool per batch element: one matmul against the
    # precomputed (L, NB) pooling matrix (1/(Hz*Wz) on valid lanes, 0 elsewhere).
    pool = jnp.dot(g, pm_ref[...], preferred_element_type=jnp.float32)   # (2C, NB)
    pt = pool.T                                                          # (NB, 2C)
    gamma = (3.0 / (1.0 + jnp.exp(-pt[:, :c]))).reshape(nb * c, 1)       # sigmoid*3
    beta = pt[:, c:].reshape(nb * c, 1)

    # ---------------- instance norm + modulation on a (NB*C, HW) slab --------------
    x = x_ref[...].reshape(nb * c, hw).astype(jnp.float32)     # free merge (HW % 128 == 0)
    mu = jnp.mean(x, axis=1, keepdims=True)
    xc = x - mu
    var = jnp.mean(xc * xc, axis=1, keepdims=True)             # two-pass, f32
    xn = xc * lax.rsqrt(var + 1e-5)
    o_ref[...] = (xn * gamma + beta).astype(o_ref.dtype).reshape(nb, c, hw)


# -----------------------------------------------------------------------------
# Wrapper helpers: fused-weight construction, pooling matrix, batch-block choice
# -----------------------------------------------------------------------------
def _build_fused_weights(params):
    """Fuse mul_gate / add_gate weights into per-layer matrices for the transposed
    (channels-first) kernel layout and stack the 3x3+1x1 expand weights per tap.

    Output-channel order everywhere: [mul.e1, mul.e3, add.e1, add.e3] (torch cat
    order per gate, mul gate first) so rows [:C] of the Fire2 output drive gamma
    and rows [C:] drive beta.
    """
    m, a = params["mul_gate"], params["add_gate"]

    def squeeze1(fm, fa):        # Fire1: both gates read the same zp -> stack rows
        w = jnp.concatenate([fm["w_sq"].T, fa["w_sq"].T], axis=0)        # (S1f, Cz)
        b = jnp.concatenate([fm["b_sq"], fa["b_sq"]], axis=1).T          # (S1f, 1)
        return w, b

    def squeeze2(fm, fa):        # Fire2: each gate only sees its own Fire1 output
        wm, wa = fm["w_sq"].T, fa["w_sq"].T
        w = jnp.zeros((wm.shape[0] + wa.shape[0], wm.shape[1] + wa.shape[1]),
                      jnp.float32)
        w = w.at[:wm.shape[0], :wm.shape[1]].set(wm)
        w = w.at[wm.shape[0]:, wm.shape[1]:].set(wa)
        b = jnp.concatenate([fm["b_sq"], fa["b_sq"]], axis=1).T
        return w, b

    def expand_taps(fm, fa):
        S = fm["w_e1"].shape[0]
        E1m, E3m = fm["w_e1"].shape[1], fm["w_e3"].shape[3]
        E1a, E3a = fa["w_e1"].shape[1], fa["w_e3"].shape[3]
        Et, S2 = E1m + E3m + E1a + E3a, 2 * S
        W = jnp.zeros((3, 3, Et, S2), jnp.float32)
        W = W.at[:, :, E1m:E1m + E3m, :S].set(jnp.transpose(fm["w_e3"], (0, 1, 3, 2)))
        W = W.at[:, :, E1m + E3m + E1a:, S:].set(jnp.transpose(fa["w_e3"], (0, 1, 3, 2)))
        W = W.at[1, 1, :E1m, :S].set(fm["w_e1"].T)                       # centre tap
        W = W.at[1, 1, E1m + E3m:E1m + E3m + E1a, S:].set(fa["w_e1"].T)  # centre tap
        b = jnp.concatenate([fm["b_e1"], fm["b_e3"], fa["b_e1"], fa["b_e3"]],
                            axis=1).T
        return W.reshape(9, Et, S2), b

    w1s, b1s = squeeze1(m["fire1"], a["fire1"])
    w1e, b1e = expand_taps(m["fire1"], a["fire1"])
    w2s, b2s = squeeze2(m["fire2"], a["fire2"])
    w2e, b2e = expand_taps(m["fire2"], a["fire2"])
    bf16 = jnp.bfloat16      # MXU operands bf16 (v5e/v6e/v7x native); f32 accumulate
    return dict(w1s=w1s.astype(bf16), b1s=b1s, w1e=w1e.astype(bf16), b1e=b1e,
                w2s=w2s.astype(bf16), b2s=b2s, w2e=w2e.astype(bf16), b2e=b2e)


def _pool_matrix(nb, hp, wp, ho, wo):
    """(NB*Hp*Wp, NB) matrix implementing the masked global mean over the valid
    Ho x Wo window of each batch sub-block of the flat lane axis."""
    p = hp * wp
    pm = np.zeros((nb * p, nb), np.float32)
    inv = 1.0 / float(ho * wo)
    for b in range(nb):
        for y in range(ho):
            base = b * p + y * wp
            pm[base:base + wo, b] = inv
    return jnp.asarray(pm)


def _pick_block_n(n, cap=8):
    """Largest divisor of n (<= cap) that keeps the grid length even so
    dimension_semantics=('parallel',) can shard across both v7x TensorCores;
    fall back to the largest divisor.  Per-step VMEM stays tiny at these sizes
    (well under the 32 MiB default scoped limit on every generation)."""
    divs = [d for d in range(1, min(n, cap) + 1) if n % d == 0]
    even = [d for d in divs if (n // d) % 2 == 0]
    return max(even) if even else max(divs)


# -----------------------------------------------------------------------------
# Public forward: one pallas_call for the whole module
# -----------------------------------------------------------------------------
def adaptive_instance_norm(x_nchw, z_nchw, params, *, block_n=None):
    N, C, H, W = x_nchw.shape
    _, Cz, Hz, Wz = z_nchw.shape
    Hp, Wp = Hz + 4, Wz + 4                       # ReflectionPad2d(2)
    P = Hp * Wp
    HW = H * W

    NB = _pick_block_n(N) if block_n is None else block_n
    assert N % NB == 0, "batch block must divide N"
    G = N // NB

    fw = _build_fused_weights(params)
    pm = _pool_matrix(NB, Hp, Wp, Hz, Wz)         # Fire2 valid output = Hz x Wz

    # z is tiny: reflection-pad and regroup it in the wrapper so the kernel sees
    # (Cz, NB*P) with batch-major lane blocks and needs no in-kernel relayout.
    # x is left untouched (no transpose glue for the big tensor).
    zp = jnp.pad(z_nchw.astype(jnp.float32),
                 ((0, 0), (0, 0), (2, 2), (2, 2)), mode="reflect")
    zp_g = (zp.reshape(G, NB, Cz, P)
              .transpose(0, 2, 1, 3)
              .reshape(G, Cz, NB * P))

    # Dropout(0.25) -> identity in eval mode; Upsample(scale_factor=1) -> identity
    x3 = x_nchw.astype(jnp.float32).reshape(N, C, HW)

    kernel = functools.partial(_fused_adain_kernel, wp=Wp)

    def wspec(arr):
        nd = arr.ndim
        return pl.BlockSpec(arr.shape, lambda g, _nd=nd: (0,) * _nd)

    # Advisory cost estimate for XLA's scheduler around the custom call.
    s1f, e1t = fw["w1s"].shape[0], fw["w1e"].shape[1]
    s2f, e2t = fw["w2s"].shape[0], fw["w2e"].shape[1]
    flops = int(N * (2 * P * (Cz * s1f + 9 * s1f * e1t + e1t * s2f + 9 * s2f * e2t)
                     + 2 * P * e2t * NB + 8 * C * HW))
    transcendentals = int(N * (P * e1t + 4 * C))
    w_bytes = sum(int(np.prod(v.shape)) * v.dtype.itemsize for v in fw.values())
    bytes_accessed = int(8 * N * C * HW + 4 * N * Cz * P + 4 * int(pm.size) + w_bytes)

    out = pl.pallas_call(
        kernel,
        out_shape=jax.ShapeDtypeStruct((N, C, HW), jnp.float32),
        grid=(G,),
        in_specs=[
            pl.BlockSpec((NB, C, HW), lambda g: (g, 0, 0)),        # x slab
            pl.BlockSpec((1, Cz, NB * P), lambda g: (g, 0, 0)),    # grouped padded z
            wspec(pm),
            wspec(fw["w1s"]), wspec(fw["b1s"]), wspec(fw["w1e"]), wspec(fw["b1e"]),
            wspec(fw["w2s"]), wspec(fw["b2s"]), wspec(fw["w2e"]), wspec(fw["b2e"]),
        ],
        out_specs=pl.BlockSpec((NB, C, HW), lambda g: (g, 0, 0)),
        compiler_params=pltpu.CompilerParams(dimension_semantics=("parallel",)),
        cost_estimate=pl.CostEstimate(flops=flops, transcendentals=transcendentals,
                                      bytes_accessed=bytes_accessed),
    )(x3, zp_g, pm, fw["w1s"], fw["b1s"], fw["w1e"], fw["b1e"],
      fw["w2s"], fw["b2s"], fw["w2e"], fw["b2e"])
    return out.reshape(N, C, H, W)                # already NCHW


# -----------------------------------------------------------------------------
# Deterministic parameter initialization (shapes from the torch __init__)
# -----------------------------------------------------------------------------
def _init_gate_params(key, in_z, in_x):
    sq = in_z // 2
    e1_ = in_z // 2            # fire1 expand planes (per branch)
    e2_ = in_x // 2            # fire2 expand planes (per branch)
    keys = jax.random.split(key, 12)

    def u(k, shape, fan_in):
        bound = 1.0 / np.sqrt(float(fan_in))
        return jax.random.uniform(k, shape, jnp.float32, -bound, bound)

    fire1 = dict(
        w_sq=u(keys[0], (in_z, sq), in_z), b_sq=u(keys[1], (1, sq), in_z),
        w_e1=u(keys[2], (sq, e1_), sq),    b_e1=u(keys[3], (1, e1_), sq),
        w_e3=u(keys[4], (3, 3, sq, e1_), sq * 9), b_e3=u(keys[5], (1, e1_), sq * 9),
    )
    fire2 = dict(
        w_sq=u(keys[6], (in_z, sq), in_z), b_sq=u(keys[7], (1, sq), in_z),
        w_e1=u(keys[8], (sq, e2_), sq),    b_e1=u(keys[9], (1, e2_), sq),
        w_e3=u(keys[10], (3, 3, sq, e2_), sq * 9), b_e3=u(keys[11], (1, e2_), sq * 9),
    )
    return dict(fire1=fire1, fire2=fire2)


# -----------------------------------------------------------------------------
# Pure-JAX reference (un-fused, f32, for verification only)
# -----------------------------------------------------------------------------
def _conv_nhwc(x, w_hwio, b):
    out = lax.conv_general_dilated(x, w_hwio, (1, 1), "VALID",
                                   dimension_numbers=("NHWC", "HWIO", "NHWC"))
    return out + b.reshape(1, 1, 1, -1)


def _fire_ref(zp, fp, post_act):
    w_sq = fp["w_sq"].reshape(1, 1, *fp["w_sq"].shape)
    sq = jax.nn.relu(_conv_nhwc(zp, w_sq, fp["b_sq"]))
    w_e1 = fp["w_e1"].reshape(1, 1, *fp["w_e1"].shape)
    e1 = jax.nn.relu(_conv_nhwc(sq[:, 1:-1, 1:-1, :], w_e1, fp["b_e1"]))
    e3 = jax.nn.relu(_conv_nhwc(sq, fp["w_e3"], fp["b_e3"]))
    out = jnp.concatenate([e1, e3], axis=-1)
    if post_act == "selu":
        out = jax.nn.selu(out)
    return out


def _forward_ref(x_nchw, z_nchw, params):
    def gate(gp):
        z = jnp.transpose(z_nchw, (0, 2, 3, 1)).astype(jnp.float32)
        zp = jnp.pad(z, ((0, 0), (2, 2), (2, 2), (0, 0)), mode="reflect")
        h = _fire_ref(zp, gp["fire1"], "selu")
        return _fire_ref(h, gp["fire2"], "none")

    gm = gate(params["mul_gate"])
    ga = gate(params["add_gate"])
    gamma = jax.nn.sigmoid(jnp.mean(gm, (1, 2), keepdims=True)) * 3.0
    beta = jnp.mean(ga, (1, 2), keepdims=True)
    x = jnp.transpose(x_nchw, (0, 2, 3, 1)).astype(jnp.float32)
    mu = jnp.mean(x, (1, 2), keepdims=True)
    var = jnp.mean((x - mu) ** 2, (1, 2), keepdims=True)
    xn = (x - mu) / jnp.sqrt(var + 1e-5)
    return jnp.transpose(xn * gamma + beta, (0, 3, 1, 2))


# -----------------------------------------------------------------------------
if __name__ == "__main__":
    key = jax.random.PRNGKey(0)
    kx, kz, kp1, kp2, kx2, kz2 = jax.random.split(key, 6)

    in_x, in_z = 4, 4
    H, W = 16, 16
    Hz, Wz = 8, 8
    params = {
        "mul_gate": _init_gate_params(kp1, in_z, in_x),
        "add_gate": _init_gate_params(kp2, in_z, in_x),
    }

    fwd = jax.jit(adaptive_instance_norm)

    # N=2 -> NB=1, grid=(2,): keeps both v7x TensorCores busy.
    x = jax.random.normal(kx, (2, in_x, H, W), jnp.float32)
    z = jax.random.normal(kz, (2, in_z, Hz, Wz), jnp.float32)
    out = jax.block_until_ready(fwd(x, z, params))
    assert out.shape == (2, in_x, H, W)
    ref = _forward_ref(x, z, params)
    # bf16 MXU operands in the gate path -> slightly looser tolerance than pure f32.
    np.testing.assert_allclose(np.asarray(out), np.asarray(ref), rtol=2e-2, atol=2e-2)

    # N=4 -> NB=2, grid=(2,): exercises multi-batch blocking (cross-batch lane shifts
    # must only ever touch positions zeroed by the pooling mask).
    x4 = jax.random.normal(kx2, (4, in_x, H, W), jnp.float32)
    z4 = jax.random.normal(kz2, (4, in_z, Hz, Wz), jnp.float32)
    out4 = jax.block_until_ready(fwd(x4, z4, params))
    ref4 = _forward_ref(x4, z4, params)
    np.testing.assert_allclose(np.asarray(out4), np.asarray(ref4), rtol=2e-2, atol=2e-2)

    print("KERNEL_OK")
</pallas_src>

<mosaic_0001>
module attributes {stable_mosaic.version = 11 : i64} {
  func.func @_fused_adain_kernel(%arg0: i32, %arg1: memref<1x4x256xf32, #tpu.memory_space<vmem>>, %arg2: memref<1x4x144xf32, #tpu.memory_space<vmem>>, %arg3: memref<144x1xf32, #tpu.memory_space<vmem>>, %arg4: memref<4x4xbf16, #tpu.memory_space<vmem>>, %arg5: memref<4x1xf32, #tpu.memory_space<vmem>>, %arg6: memref<9x8x4xbf16, #tpu.memory_space<vmem>>, %arg7: memref<8x1xf32, #tpu.memory_space<vmem>>, %arg8: memref<4x8xbf16, #tpu.memory_space<vmem>>, %arg9: memref<4x1xf32, #tpu.memory_space<vmem>>, %arg10: memref<9x8x4xbf16, #tpu.memory_space<vmem>>, %arg11: memref<8x1xf32, #tpu.memory_space<vmem>>, %arg12: memref<1x4x256xf32, #tpu.memory_space<vmem>>) attributes {dimension_semantics = [#tpu.dimension_semantics<parallel>], iteration_bounds = array<i64: 2>, scalar_prefetch = 0 : i64, scratch_operands = 0 : i64, tpu.core_type = #tpu.core_type<tc>, window_params = [{transform_indices = @transform_0, window_bounds = array<i64: 1, 4, 256>}, {transform_indices = @transform_1, window_bounds = array<i64: 1, 4, 144>}, {pipeline_mode = #tpu.pipeline_mode<synchronous>, transform_indices = @transform_2, window_bounds = array<i64: 144, 1>}, {pipeline_mode = #tpu.pipeline_mode<synchronous>, transform_indices = @transform_3, window_bounds = array<i64: 4, 4>}, {pipeline_mode = #tpu.pipeline_mode<synchronous>, transform_indices = @transform_4, window_bounds = array<i64: 4, 1>}, {pipeline_mode = #tpu.pipeline_mode<synchronous>, transform_indices = @transform_5, window_bounds = array<i64: 9, 8, 4>}, {pipeline_mode = #tpu.pipeline_mode<synchronous>, transform_indices = @transform_6, window_bounds = array<i64: 8, 1>}, {pipeline_mode = #tpu.pipeline_mode<synchronous>, transform_indices = @transform_7, window_bounds = array<i64: 4, 8>}, {pipeline_mode = #tpu.pipeline_mode<synchronous>, transform_indices = @transform_8, window_bounds = array<i64: 4, 1>}, {pipeline_mode = #tpu.pipeline_mode<synchronous>, transform_indices = @transform_9, window_bounds = array<i64: 9, 8, 4>}, {pipeline_mode = #tpu.pipeline_mode<synchronous>, transform_indices = @transform_10, window_bounds = array<i64: 8, 1>}, {transform_indices = @transform_11, window_bounds = array<i64: 1, 4, 256>}]} {
    %c0 = arith.constant 0 : index
    %c0_0 = arith.constant 0 : index
    %c0_1 = arith.constant 0 : index
    %0 = vector.load %arg2[%c0, %c0_0, %c0_1] : memref<1x4x144xf32, #tpu.memory_space<vmem>>, vector<1x4x144xf32>
    %1 = vector.shape_cast %0 : vector<1x4x144xf32> to vector<4x144xf32>
    %2 = arith.truncf %1 : vector<4x144xf32> to vector<4x144xbf16>
    %c0_2 = arith.constant 0 : index
    %c0_3 = arith.constant 0 : index
    %3 = vector.load %arg4[%c0_2, %c0_3] : memref<4x4xbf16, #tpu.memory_space<vmem>>, vector<4x4xbf16>
    %cst = arith.constant dense<0.000000e+00> : vector<4x144xf32>
    %4 = tpu.matmul %3, %2, %cst {dimension_numbers = #tpu.dot_dimension_numbers<[1], [0], [0], [1], [0, 0, 1, 1], [], []>} : vector<4x4xbf16>, vector<4x144xbf16>, vector<4x144xf32> -> vector<4x144xf32>
    %c0_4 = arith.constant 0 : index
    %c0_5 = arith.constant 0 : index
    %5 = vector.load %arg5[%c0_4, %c0_5] : memref<4x1xf32, #tpu.memory_space<vmem>>, vector<4x1xf32>
    %6 = vector.broadcast %5 : vector<4x1xf32> to vector<4x144xf32>
    %7 = arith.addf %4, %6 : vector<4x144xf32>
    %cst_6 = arith.constant 0.000000e+00 : f32
    %8 = vector.broadcast %cst_6 : f32 to vector<4x144xf32>
    %9 = arith.maximumf %7, %8 : vector<4x144xf32>
    %c0_7 = arith.constant 0 : index
    %c0_8 = arith.constant 0 : index
    %c0_9 = arith.constant 0 : index
    %10 = vector.load %arg6[%c0_7, %c0_8, %c0_9] : memref<9x8x4xbf16, #tpu.memory_space<vmem>>, vector<9x8x4xbf16>
    %cst_10 = arith.constant 0.000000e+00 : f32
    %11 = vector.broadcast %cst_10 : f32 to vector<8x144xf32>
    %12 = arith.truncf %9 : vector<4x144xf32> to vector<4x144xbf16>
    %13 = vector.extract_strided_slice %10 {offsets = [0, 0, 0], sizes = [1, 8, 4], strides = [1, 1, 1]} : vector<9x8x4xbf16> to vector<1x8x4xbf16>
    %14 = vector.shape_cast %13 : vector<1x8x4xbf16> to vector<8x4xbf16>
    %cst_11 = arith.constant dense<0.000000e+00> : vector<8x144xf32>
    %15 = tpu.matmul %14, %12, %cst_11 {dimension_numbers = #tpu.dot_dimension_numbers<[1], [0], [0], [1], [0, 0, 1, 1], [], []>} : vector<8x4xbf16>, vector<4x144xbf16>, vector<8x144xf32> -> vector<8x144xf32>
    %16 = arith.addf %11, %15 : vector<8x144xf32>
    %17 = vector.extract_strided_slice %9 {offsets = [0, 1], sizes = [4, 143], strides = [1, 1]} : vector<4x144xf32> to vector<4x143xf32>
    %18 = vector.extract_strided_slice %9 {offsets = [0, 0], sizes = [4, 1], strides = [1, 1]} : vector<4x144xf32> to vector<4x1xf32>
    %19 = tpu.concatenate %17, %18 in 1 : vector<4x143xf32>, vector<4x1xf32> -> vector<4x144xf32>
    %20 = arith.truncf %19 : vector<4x144xf32> to vector<4x144xbf16>
    %21 = vector.extract_strided_slice %10 {offsets = [1, 0, 0], sizes = [1, 8, 4], strides = [1, 1, 1]} : vector<9x8x4xbf16> to vector<1x8x4xbf16>
    %22 = vector.shape_cast %21 : vector<1x8x4xbf16> to vector<8x4xbf16>
    %cst_12 = arith.constant dense<0.000000e+00> : vector<8x144xf32>
    %23 = tpu.matmul %22, %20, %cst_12 {dimension_numbers = #tpu.dot_dimension_numbers<[1], [0], [0], [1], [0, 0, 1, 1], [], []>} : vector<8x4xbf16>, vector<4x144xbf16>, vector<8x144xf32> -> vector<8x144xf32>
    %24 = arith.addf %16, %23 : vector<8x144xf32>
    %25 = vector.extract_strided_slice %9 {offsets = [0, 2], sizes = [4, 142], strides = [1, 1]} : vector<4x144xf32> to vector<4x142xf32>
    %26 = vector.extract_strided_slice %9 {offsets = [0, 0], sizes = [4, 2], strides = [1, 1]} : vector<4x144xf32> to vector<4x2xf32>
    %27 = tpu.concatenate %25, %26 in 1 : vector<4x142xf32>, vector<4x2xf32> -> vector<4x144xf32>
    %28 = arith.truncf %27 : vector<4x144xf32> to vector<4x144xbf16>
    %29 = vector.extract_strided_slice %10 {offsets = [2, 0, 0], sizes = [1, 8, 4], strides = [1, 1, 1]} : vector<9x8x4xbf16> to vector<1x8x4xbf16>
    %30 = vector.shape_cast %29 : vector<1x8x4xbf16> to vector<8x4xbf16>
    %cst_13 = arith.constant dense<0.000000e+00> : vector<8x144xf32>
    %31 = tpu.matmul %30, %28, %cst_13 {dimension_numbers = #tpu.dot_dimension_numbers<[1], [0], [0], [1], [0, 0, 1, 1], [], []>} : vector<8x4xbf16>, vector<4x144xbf16>, vector<8x144xf32> -> vector<8x144xf32>
    %32 = arith.addf %24, %31 : vector<8x144xf32>
    %33 = vector.extract_strided_slice %9 {offsets = [0, 12], sizes = [4, 132], strides = [1, 1]} : vector<4x144xf32> to vector<4x132xf32>
    %34 = vector.extract_strided_slice %9 {offsets = [0, 0], sizes = [4, 12], strides = [1, 1]} : vector<4x144xf32> to vector<4x12xf32>
    %35 = tpu.concatenate %33, %34 in 1 : vector<4x132xf32>, vector<4x12xf32> -> vector<4x144xf32>
    %36 = arith.truncf %35 : vector<4x144xf32> to vector<4x144xbf16>
    %37 = vector.extract_strided_slice %10 {offsets = [3, 0, 0], sizes = [1, 8, 4], strides = [1, 1, 1]} : vector<9x8x4xbf16> to vector<1x8x4xbf16>
    %38 = vector.shape_cast %37 : vector<1x8x4xbf16> to vector<8x4xbf16>
    %cst_14 = arith.constant dense<0.000000e+00> : vector<8x144xf32>
    %39 = tpu.matmul %38, %36, %cst_14 {dimension_numbers = #tpu.dot_dimension_numbers<[1], [0], [0], [1], [0, 0, 1, 1], [], []>} : vector<8x4xbf16>, vector<4x144xbf16>, vector<8x144xf32> -> vector<8x144xf32>
    %40 = arith.addf %32, %39 : vector<8x144xf32>
    %41 = vector.extract_strided_slice %9 {offsets = [0, 13], sizes = [4, 131], strides = [1, 1]} : vector<4x144xf32> to vector<4x131xf32>
    %42 = vector.extract_strided_slice %9 {offsets = [0, 0], sizes = [4, 13], strides = [1, 1]} : vector<4x144xf32> to vector<4x13xf32>
    %43 = tpu.concatenate %41, %42 in 1 : vector<4x131xf32>, vector<4x13xf32> -> vector<4x144xf32>
    %44 = arith.truncf %43 : vector<4x144xf32> to vector<4x144xbf16>
    %45 = vector.extract_strided_slice %10 {offsets = [4, 0, 0], sizes = [1, 8, 4], strides = [1, 1, 1]} : vector<9x8x4xbf16> to vector<1x8x4xbf16>
    %46 = vector.shape_cast %45 : vector<1x8x4xbf16> to vector<8x4xbf16>
    %cst_15 = arith.constant dense<0.000000e+00> : vector<8x144xf32>
    %47 = tpu.matmul %46, %44, %cst_15 {dimension_numbers = #tpu.dot_dimension_numbers<[1], [0], [0], [1], [0, 0, 1, 1], [], []>} : vector<8x4xbf16>, vector<4x144xbf16>, vector<8x144xf32> -> vector<8x144xf32>
    %48 = arith.addf %40, %47 : vector<8x144xf32>
    %49 = vector.extract_strided_slice %9 {offsets = [0, 14], sizes = [4, 130], strides = [1, 1]} : vector<4x144xf32> to vector<4x130xf32>
    %50 = vector.extract_strided_slice %9 {offsets = [0, 0], sizes = [4, 14], strides = [1, 1]} : vector<4x144xf32> to vector<4x14xf32>
    %51 = tpu.concatenate %49, %50 in 1 : vector<4x130xf32>, vector<4x14xf32> -> vector<4x144xf32>
    %52 = arith.truncf %51 : vector<4x144xf32> to vector<4x144xbf16>
    %53 = vector.extract_strided_slice %10 {offsets = [5, 0, 0], sizes = [1, 8, 4], strides = [1, 1, 1]} : vector<9x8x4xbf16> to vector<1x8x4xbf16>
    %54 = vector.shape_cast %53 : vector<1x8x4xbf16> to vector<8x4xbf16>
    %cst_16 = arith.constant dense<0.000000e+00> : vector<8x144xf32>
    %55 = tpu.matmul %54, %52, %cst_16 {dimension_numbers = #tpu.dot_dimension_numbers<[1], [0], [0], [1], [0, 0, 1, 1], [], []>} : vector<8x4xbf16>, vector<4x144xbf16>, vector<8x144xf32> -> vector<8x144xf32>
    %56 = arith.addf %48, %55 : vector<8x144xf32>
    %57 = vector.extract_strided_slice %9 {offsets = [0, 24], sizes = [4, 120], strides = [1, 1]} : vector<4x144xf32> to vector<4x120xf32>
    %58 = vector.extract_strided_slice %9 {offsets = [0, 0], sizes = [4, 24], strides = [1, 1]} : vector<4x144xf32> to vector<4x24xf32>
    %59 = tpu.concatenate %57, %58 in 1 : vector<4x120xf32>, vector<4x24xf32> -> vector<4x144xf32>
    %60 = arith.truncf %59 : vector<4x144xf32> to vector<4x144xbf16>
    %61 = vector.extract_strided_slice %10 {offsets = [6, 0, 0], sizes = [1, 8, 4], strides = [1, 1, 1]} : vector<9x8x4xbf16> to vector<1x8x4xbf16>
    %62 = vector.shape_cast %61 : vector<1x8x4xbf16> to vector<8x4xbf16>
    %cst_17 = arith.constant dense<0.000000e+00> : vector<8x144xf32>
    %63 = tpu.matmul %62, %60, %cst_17 {dimension_numbers = #tpu.dot_dimension_numbers<[1], [0], [0], [1], [0, 0, 1, 1], [], []>} : vector<8x4xbf16>, vector<4x144xbf16>, vector<8x144xf32> -> vector<8x144xf32>
    %64 = arith.addf %56, %63 : vector<8x144xf32>
    %65 = vector.extract_strided_slice %9 {offsets = [0, 25], sizes = [4, 119], strides = [1, 1]} : vector<4x144xf32> to vector<4x119xf32>
    %66 = vector.extract_strided_slice %9 {offsets = [0, 0], sizes = [4, 25], strides = [1, 1]} : vector<4x144xf32> to vector<4x25xf32>
    %67 = tpu.concatenate %65, %66 in 1 : vector<4x119xf32>, vector<4x25xf32> -> vector<4x144xf32>
    %68 = arith.truncf %67 : vector<4x144xf32> to vector<4x144xbf16>
    %69 = vector.extract_strided_slice %10 {offsets = [7, 0, 0], sizes = [1, 8, 4], strides = [1, 1, 1]} : vector<9x8x4xbf16> to vector<1x8x4xbf16>
    %70 = vector.shape_cast %69 : vector<1x8x4xbf16> to vector<8x4xbf16>
    %cst_18 = arith.constant dense<0.000000e+00> : vector<8x144xf32>
    %71 = tpu.matmul %70, %68, %cst_18 {dimension_numbers = #tpu.dot_dimension_numbers<[1], [0], [0], [1], [0, 0, 1, 1], [], []>} : vector<8x4xbf16>, vector<4x144xbf16>, vector<8x144xf32> -> vector<8x144xf32>
    %72 = arith.addf %64, %71 : vector<8x144xf32>
    %73 = vector.extract_strided_slice %9 {offsets = [0, 26], sizes = [4, 118], strides = [1, 1]} : vector<4x144xf32> to vector<4x118xf32>
    %74 = vector.extract_strided_slice %9 {offsets = [0, 0], sizes = [4, 26], strides = [1, 1]} : vector<4x144xf32> to vector<4x26xf32>
    %75 = tpu.concatenate %73, %74 in 1 : vector<4x118xf32>, vector<4x26xf32> -> vector<4x144xf32>
    %76 = arith.truncf %75 : vector<4x144xf32> to vector<4x144xbf16>
    %77 = vector.extract_strided_slice %10 {offsets = [8, 0, 0], sizes = [1, 8, 4], strides = [1, 1, 1]} : vector<9x8x4xbf16> to vector<1x8x4xbf16>
    %78 = vector.shape_cast %77 : vector<1x8x4xbf16> to vector<8x4xbf16>
    %cst_19 = arith.constant dense<0.000000e+00> : vector<8x144xf32>
    %79 = tpu.matmul %78, %76, %cst_19 {dimension_numbers = #tpu.dot_dimension_numbers<[1], [0], [0], [1], [0, 0, 1, 1], [], []>} : vector<8x4xbf16>, vector<4x144xbf16>, vector<8x144xf32> -> vector<8x144xf32>
    %80 = arith.addf %72, %79 : vector<8x144xf32>
    %c0_20 = arith.constant 0 : index
    %c0_21 = arith.constant 0 : index
    %81 = vector.load %arg7[%c0_20, %c0_21] : memref<8x1xf32, #tpu.memory_space<vmem>>, vector<8x1xf32>
    %82 = vector.broadcast %81 : vector<8x1xf32> to vector<8x144xf32>
    %83 = arith.addf %80, %82 : vector<8x144xf32>
    %cst_22 = arith.constant 0.000000e+00 : f32
    %84 = vector.broadcast %cst_22 : f32 to vector<8x144xf32>
    %85 = arith.maximumf %83, %84 : vector<8x144xf32>
    %cst_23 = arith.constant 0.000000e+00 : f32
    %86 = vector.broadcast %cst_23 : f32 to vector<8x144xf32>
    %87 = arith.cmpf ogt, %85, %86 : vector<8x144xf32>
    %cst_24 = arith.constant 0.000000e+00 : f32
    %88 = vector.broadcast %cst_24 : f32 to vector<8x144xf32>
    %89 = arith.minimumf %85, %88 : vector<8x144xf32>
    %90 = math.exp %89 : vector<8x144xf32>
    %cst_25 = arith.constant 1.000000e+00 : f32
    %91 = vector.broadcast %cst_25 : f32 to vector<8x144xf32>
    %92 = arith.subf %90, %91 : vector<8x144xf32>
    %cst_26 = arith.constant 1.67326319 : f32
    %93 = vector.broadcast %cst_26 : f32 to vector<8x144xf32>
    %94 = arith.mulf %93, %92 : vector<8x144xf32>
    %95 = arith.select %87, %85, %94 : vector<8x144xi1>, vector<8x144xf32>
    %cst_27 = arith.constant 1.05070102 : f32
    %96 = vector.broadcast %cst_27 : f32 to vector<8x144xf32>
    %97 = arith.mulf %96, %95 : vector<8x144xf32>
    %c0_28 = arith.constant 0 : index
    %c0_29 = arith.constant 0 : index
    %98 = vector.load %arg8[%c0_28, %c0_29] : memref<4x8xbf16, #tpu.memory_space<vmem>>, vector<4x8xbf16>
    %99 = arith.truncf %97 : vector<8x144xf32> to vector<8x144xbf16>
    %cst_30 = arith.constant dense<0.000000e+00> : vector<4x144xf32>
    %100 = tpu.matmul %98, %99, %cst_30 {dimension_numbers = #tpu.dot_dimension_numbers<[1], [0], [0], [1], [0, 0, 1, 1], [], []>} : vector<4x8xbf16>, vector<8x144xbf16>, vector<4x144xf32> -> vector<4x144xf32>
    %c0_31 = arith.constant 0 : index
    %c0_32 = arith.constant 0 : index
    %101 = vector.load %arg9[%c0_31, %c0_32] : memref<4x1xf32, #tpu.memory_space<vmem>>, vector<4x1xf32>
    %102 = vector.broadcast %101 : vector<4x1xf32> to vector<4x144xf32>
    %103 = arith.addf %100, %102 : vector<4x144xf32>
    %cst_33 = arith.constant 0.000000e+00 : f32
    %104 = vector.broadcast %cst_33 : f32 to vector<4x144xf32>
    %105 = arith.maximumf %103, %104 : vector<4x144xf32>
    %c0_34 = arith.constant 0 : index
    %c0_35 = arith.constant 0 : index
    %c0_36 = arith.constant 0 : index
    %106 = vector.load %arg10[%c0_34, %c0_35, %c0_36] : memref<9x8x4xbf16, #tpu.memory_space<vmem>>, vector<9x8x4xbf16>
    %cst_37 = arith.constant 0.000000e+00 : f32
    %107 = vector.broadcast %cst_37 : f32 to vector<8x144xf32>
    %108 = arith.truncf %105 : vector<4x144xf32> to vector<4x144xbf16>
    %109 = vector.extract_strided_slice %106 {offsets = [0, 0, 0], sizes = [1, 8, 4], strides = [1, 1, 1]} : vector<9x8x4xbf16> to vector<1x8x4xbf16>
    %110 = vector.shape_cast %109 : vector<1x8x4xbf16> to vector<8x4xbf16>
    %cst_38 = arith.constant dense<0.000000e+00> : vector<8x144xf32>
    %111 = tpu.matmul %110, %108, %cst_38 {dimension_numbers = #tpu.dot_dimension_numbers<[1], [0], [0], [1], [0, 0, 1, 1], [], []>} : vector<8x4xbf16>, vector<4x144xbf16>, vector<8x144xf32> -> vector<8x144xf32>
    %112 = arith.addf %107, %111 : vector<8x144xf32>
    %113 = vector.extract_strided_slice %105 {offsets = [0, 1], sizes = [4, 143], strides = [1, 1]} : vector<4x144xf32> to vector<4x143xf32>
    %114 = vector.extract_strided_slice %105 {offsets = [0, 0], sizes = [4, 1], strides = [1, 1]} : vector<4x144xf32> to vector<4x1xf32>
    %115 = tpu.concatenate %113, %114 in 1 : vector<4x143xf32>, vector<4x1xf32> -> vector<4x144xf32>
    %116 = arith.truncf %115 : vector<4x144xf32> to vector<4x144xbf16>
    %117 = vector.extract_strided_slice %106 {offsets = [1, 0, 0], sizes = [1, 8, 4], strides = [1, 1, 1]} : vector<9x8x4xbf16> to vector<1x8x4xbf16>
    %118 = vector.shape_cast %117 : vector<1x8x4xbf16> to vector<8x4xbf16>
    %cst_39 = arith.constant dense<0.000000e+00> : vector<8x144xf32>
    %119 = tpu.matmul %118, %116, %cst_39 {dimension_numbers = #tpu.dot_dimension_numbers<[1], [0], [0], [1], [0, 0, 1, 1], [], []>} : vector<8x4xbf16>, vector<4x144xbf16>, vector<8x144xf32> -> vector<8x144xf32>
    %120 = arith.addf %112, %119 : vector<8x144xf32>
    %121 = vector.extract_strided_slice %105 {offsets = [0, 2], sizes = [4, 142], strides = [1, 1]} : vector<4x144xf32> to vector<4x142xf32>
    %122 = vector.extract_strided_slice %105 {offsets = [0, 0], sizes = [4, 2], strides = [1, 1]} : vector<4x144xf32> to vector<4x2xf32>
    %123 = tpu.concatenate %121, %122 in 1 : vector<4x142xf32>, vector<4x2xf32> -> vector<4x144xf32>
    %124 = arith.truncf %123 : vector<4x144xf32> to vector<4x144xbf16>
    %125 = vector.extract_strided_slice %106 {offsets = [2, 0, 0], sizes = [1, 8, 4], strides = [1, 1, 1]} : vector<9x8x4xbf16> to vector<1x8x4xbf16>
    %126 = vector.shape_cast %125 : vector<1x8x4xbf16> to vector<8x4xbf16>
    %cst_40 = arith.constant dense<0.000000e+00> : vector<8x144xf32>
    %127 = tpu.matmul %126, %124, %cst_40 {dimension_numbers = #tpu.dot_dimension_numbers<[1], [0], [0], [1], [0, 0, 1, 1], [], []>} : vector<8x4xbf16>, vector<4x144xbf16>, vector<8x144xf32> -> vector<8x144xf32>
    %128 = arith.addf %120, %127 : vector<8x144xf32>
    %129 = vector.extract_strided_slice %105 {offsets = [0, 12], sizes = [4, 132], strides = [1, 1]} : vector<4x144xf32> to vector<4x132xf32>
    %130 = vector.extract_strided_slice %105 {offsets = [0, 0], sizes = [4, 12], strides = [1, 1]} : vector<4x144xf32> to vector<4x12xf32>
    %131 = tpu.concatenate %129, %130 in 1 : vector<4x132xf32>, vector<4x12xf32> -> vector<4x144xf32>
    %132 = arith.truncf %131 : vector<4x144xf32> to vector<4x144xbf16>
    %133 = vector.extract_strided_slice %106 {offsets = [3, 0, 0], sizes = [1, 8, 4], strides = [1, 1, 1]} : vector<9x8x4xbf16> to vector<1x8x4xbf16>
    %134 = vector.shape_cast %133 : vector<1x8x4xbf16> to vector<8x4xbf16>
    %cst_41 = arith.constant dense<0.000000e+00> : vector<8x144xf32>
    %135 = tpu.matmul %134, %132, %cst_41 {dimension_numbers = #tpu.dot_dimension_numbers<[1], [0], [0], [1], [0, 0, 1, 1], [], []>} : vector<8x4xbf16>, vector<4x144xbf16>, vector<8x144xf32> -> vector<8x144xf32>
    %136 = arith.addf %128, %135 : vector<8x144xf32>
    %137 = vector.extract_strided_slice %105 {offsets = [0, 13], sizes = [4, 131], strides = [1, 1]} : vector<4x144xf32> to vector<4x131xf32>
    %138 = vector.extract_strided_slice %105 {offsets = [0, 0], sizes = [4, 13], strides = [1, 1]} : vector<4x144xf32> to vector<4x13xf32>
    %139 = tpu.concatenate %137, %138 in 1 : vector<4x131xf32>, vector<4x13xf32> -> vector<4x144xf32>
    %140 = arith.truncf %139 : vector<4x144xf32> to vector<4x144xbf16>
    %141 = vector.extract_strided_slice %106 {offsets = [4, 0, 0], sizes = [1, 8, 4], strides = [1, 1, 1]} : vector<9x8x4xbf16> to vector<1x8x4xbf16>
    %142 = vector.shape_cast %141 : vector<1x8x4xbf16> to vector<8x4xbf16>
    %cst_42 = arith.constant dense<0.000000e+00> : vector<8x144xf32>
    %143 = tpu.matmul %142, %140, %cst_42 {dimension_numbers = #tpu.dot_dimension_numbers<[1], [0], [0], [1], [0, 0, 1, 1], [], []>} : vector<8x4xbf16>, vector<4x144xbf16>, vector<8x144xf32> -> vector<8x144xf32>
    %144 = arith.addf %136, %143 : vector<8x144xf32>
    %145 = vector.extract_strided_slice %105 {offsets = [0, 14], sizes = [4, 130], strides = [1, 1]} : vector<4x144xf32> to vector<4x130xf32>
    %146 = vector.extract_strided_slice %105 {offsets = [0, 0], sizes = [4, 14], strides = [1, 1]} : vector<4x144xf32> to vector<4x14xf32>
    %147 = tpu.concatenate %145, %146 in 1 : vector<4x130xf32>, vector<4x14xf32> -> vector<4x144xf32>
    %148 = arith.truncf %147 : vector<4x144xf32> to vector<4x144xbf16>
    %149 = vector.extract_strided_slice %106 {offsets = [5, 0, 0], sizes = [1, 8, 4], strides = [1, 1, 1]} : vector<9x8x4xbf16> to vector<1x8x4xbf16>
    %150 = vector.shape_cast %149 : vector<1x8x4xbf16> to vector<8x4xbf16>
    %cst_43 = arith.constant dense<0.000000e+00> : vector<8x144xf32>
    %151 = tpu.matmul %150, %148, %cst_43 {dimension_numbers = #tpu.dot_dimension_numbers<[1], [0], [0], [1], [0, 0, 1, 1], [], []>} : vector<8x4xbf16>, vector<4x144xbf16>, vector<8x144xf32> -> vector<8x144xf32>
    %152 = arith.addf %144, %151 : vector<8x144xf32>
    %153 = vector.extract_strided_slice %105 {offsets = [0, 24], sizes = [4, 120], strides = [1, 1]} : vector<4x144xf32> to vector<4x120xf32>
    %154 = vector.extract_strided_slice %105 {offsets = [0, 0], sizes = [4, 24], strides = [1, 1]} : vector<4x144xf32> to vector<4x24xf32>
    %155 = tpu.concatenate %153, %154 in 1 : vector<4x120xf32>, vector<4x24xf32> -> vector<4x144xf32>
    %156 = arith.truncf %155 : vector<4x144xf32> to vector<4x144xbf16>
    %157 = vector.extract_strided_slice %106 {offsets = [6, 0, 0], sizes = [1, 8, 4], strides = [1, 1, 1]} : vector<9x8x4xbf16> to vector<1x8x4xbf16>
    %158 = vector.shape_cast %157 : vector<1x8x4xbf16> to vector<8x4xbf16>
    %cst_44 = arith.constant dense<0.000000e+00> : vector<8x144xf32>
    %159 = tpu.matmul %158, %156, %cst_44 {dimension_numbers = #tpu.dot_dimension_numbers<[1], [0], [0], [1], [0, 0, 1, 1], [], []>} : vector<8x4xbf16>, vector<4x144xbf16>, vector<8x144xf32> -> vector<8x144xf32>
    %160 = arith.addf %152, %159 : vector<8x144xf32>
    %161 = vector.extract_strided_slice %105 {offsets = [0, 25], sizes = [4, 119], strides = [1, 1]} : vector<4x144xf32> to vector<4x119xf32>
    %162 = vector.extract_strided_slice %105 {offsets = [0, 0], sizes = [4, 25], strides = [1, 1]} : vector<4x144xf32> to vector<4x25xf32>
    %163 = tpu.concatenate %161, %162 in 1 : vector<4x119xf32>, vector<4x25xf32> -> vector<4x144xf32>
    %164 = arith.truncf %163 : vector<4x144xf32> to vector<4x144xbf16>
    %165 = vector.extract_strided_slice %106 {offsets = [7, 0, 0], sizes = [1, 8, 4], strides = [1, 1, 1]} : vector<9x8x4xbf16> to vector<1x8x4xbf16>
    %166 = vector.shape_cast %165 : vector<1x8x4xbf16> to vector<8x4xbf16>
    %cst_45 = arith.constant dense<0.000000e+00> : vector<8x144xf32>
    %167 = tpu.matmul %166, %164, %cst_45 {dimension_numbers = #tpu.dot_dimension_numbers<[1], [0], [0], [1], [0, 0, 1, 1], [], []>} : vector<8x4xbf16>, vector<4x144xbf16>, vector<8x144xf32> -> vector<8x144xf32>
    %168 = arith.addf %160, %167 : vector<8x144xf32>
    %169 = vector.extract_strided_slice %105 {offsets = [0, 26], sizes = [4, 118], strides = [1, 1]} : vector<4x144xf32> to vector<4x118xf32>
    %170 = vector.extract_strided_slice %105 {offsets = [0, 0], sizes = [4, 26], strides = [1, 1]} : vector<4x144xf32> to vector<4x26xf32>
    %171 = tpu.concatenate %169, %170 in 1 : vector<4x118xf32>, vector<4x26xf32> -> vector<4x144xf32>
    %172 = arith.truncf %171 : vector<4x144xf32> to vector<4x144xbf16>
    %173 = vector.extract_strided_slice %106 {offsets = [8, 0, 0], sizes = [1, 8, 4], strides = [1, 1, 1]} : vector<9x8x4xbf16> to vector<1x8x4xbf16>
    %174 = vector.shape_cast %173 : vector<1x8x4xbf16> to vector<8x4xbf16>
    %cst_46 = arith.constant dense<0.000000e+00> : vector<8x144xf32>
    %175 = tpu.matmul %174, %172, %cst_46 {dimension_numbers = #tpu.dot_dimension_numbers<[1], [0], [0], [1], [0, 0, 1, 1], [], []>} : vector<8x4xbf16>, vector<4x144xbf16>, vector<8x144xf32> -> vector<8x144xf32>
    %176 = arith.addf %168, %175 : vector<8x144xf32>
    %c0_47 = arith.constant 0 : index
    %c0_48 = arith.constant 0 : index
    %177 = vector.load %arg11[%c0_47, %c0_48] : memref<8x1xf32, #tpu.memory_space<vmem>>, vector<8x1xf32>
    %178 = vector.broadcast %177 : vector<8x1xf32> to vector<8x144xf32>
    %179 = arith.addf %176, %178 : vector<8x144xf32>
    %cst_49 = arith.constant 0.000000e+00 : f32
    %180 = vector.broadcast %cst_49 : f32 to vector<8x144xf32>
    %181 = arith.maximumf %179, %180 : vector<8x144xf32>
    %c0_50 = arith.constant 0 : index
    %c0_51 = arith.constant 0 : index
    %182 = vector.load %arg3[%c0_50, %c0_51] : memref<144x1xf32, #tpu.memory_space<vmem>>, vector<144x1xf32>
    %cst_52 = arith.constant dense<0.000000e+00> : vector<8x1xf32>
    %183 = tpu.matmul %181, %182, %cst_52 {dimension_numbers = #tpu.dot_dimension_numbers<[1], [0], [0], [1], [0, 0, 1, 1], [], []>} : vector<8x144xf32>, vector<144x1xf32>, vector<8x1xf32> -> vector<8x1xf32>
    %184 = tpu.transpose %183, [1, 0] : vector<8x1xf32> -> vector<1x8xf32>
    %185 = vector.extract_strided_slice %184 {offsets = [0, 0], sizes = [1, 4], strides = [1, 1]} : vector<1x8xf32> to vector<1x4xf32>
    %cst_53 = arith.constant 0.000000e+00 : f32
    %186 = vector.broadcast %cst_53 : f32 to vector<1x4xf32>
    %187 = arith.subf %186, %185 : vector<1x4xf32>
    %188 = math.exp %187 : vector<1x4xf32>
    %cst_54 = arith.constant 1.000000e+00 : f32
    %189 = vector.broadcast %cst_54 : f32 to vector<1x4xf32>
    %190 = arith.addf %189, %188 : vector<1x4xf32>
    %cst_55 = arith.constant 3.000000e+00 : f32
    %191 = vector.broadcast %cst_55 : f32 to vector<1x4xf32>
    %192 = arith.divf %191, %190 : vector<1x4xf32>
    %193 = vector.shape_cast %192 : vector<1x4xf32> to vector<4x1xf32>
    %194 = vector.extract_strided_slice %184 {offsets = [0, 4], sizes = [1, 4], strides = [1, 1]} : vector<1x8xf32> to vector<1x4xf32>
    %195 = vector.shape_cast %194 : vector<1x4xf32> to vector<4x1xf32>
    %c0_56 = arith.constant 0 : index
    %c0_57 = arith.constant 0 : index
    %c0_58 = arith.constant 0 : index
    %196 = vector.load %arg1[%c0_56, %c0_57, %c0_58] : memref<1x4x256xf32, #tpu.memory_space<vmem>>, vector<1x4x256xf32>
    %197 = vector.shape_cast %196 : vector<1x4x256xf32> to vector<4x256xf32>
    %cst_59 = arith.constant dense<0.000000e+00> : vector<4xf32>
    %198 = vector.multi_reduction <add>, %197, %cst_59 [1] : vector<4x256xf32> to vector<4xf32>
    %199 = vector.shape_cast %198 : vector<4xf32> to vector<4x1xf32>
    %cst_60 = arith.constant 2.560000e+02 : f32
    %200 = vector.broadcast %cst_60 : f32 to vector<4x1xf32>
    %201 = arith.divf %199, %200 : vector<4x1xf32>
    %202 = vector.broadcast %201 : vector<4x1xf32> to vector<4x256xf32>
    %203 = arith.subf %197, %202 : vector<4x256xf32>
    %204 = arith.mulf %203, %203 : vector<4x256xf32>
    %cst_61 = arith.constant dense<0.000000e+00> : vector<4xf32>
    %205 = vector.multi_reduction <add>, %204, %cst_61 [1] : vector<4x256xf32> to vector<4xf32>
    %206 = vector.shape_cast %205 : vector<4xf32> to vector<4x1xf32>
    %cst_62 = arith.constant 2.560000e+02 : f32
    %207 = vector.broadcast %cst_62 : f32 to vector<4x1xf32>
    %208 = arith.divf %206, %207 : vector<4x1xf32>
    %cst_63 = arith.constant 9.99999974E-6 : f32
    %209 = vector.broadcast %cst_63 : f32 to vector<4x1xf32>
    %210 = arith.addf %208, %209 : vector<4x1xf32>
    %211 = math.rsqrt %210 : vector<4x1xf32>
    %212 = vector.broadcast %211 : vector<4x1xf32> to vector<4x256xf32>
    %213 = arith.mulf %203, %212 : vector<4x256xf32>
    %214 = vector.broadcast %193 : vector<4x1xf32> to vector<4x256xf32>
    %215 = arith.mulf %213, %214 : vector<4x256xf32>
    %216 = vector.broadcast %195 : vector<4x1xf32> to vector<4x256xf32>
    %217 = arith.addf %215, %216 : vector<4x256xf32>
    %218 = vector.shape_cast %217 : vector<4x256xf32> to vector<1x4x256xf32>
    %c0_64 = arith.constant 0 : index
    %c0_65 = arith.constant 0 : index
    %c0_66 = arith.constant 0 : index
    %219 = vector.load %arg12[%c0_64, %c0_65, %c0_66] : memref<1x4x256xf32, #tpu.memory_space<vmem>>, vector<1x4x256xf32>
    tpu.vector_store %arg12[%c0_64, %c0_65, %c0_66], %218 {strides = array<i32>} : memref<1x4x256xf32, #tpu.memory_space<vmem>>, vector<1x4x256xf32>,
    return
  }
  func.func @transform_0(%arg0: i32) -> (i32, i32, i32) {
    %c0_i32 = arith.constant 0 : i32
    %c0_i32_0 = arith.constant 0 : i32
    %c0_i32_1 = arith.constant 0 : i32
    return %arg0, %c0_i32, %c0_i32_0 : i32, i32, i32
  }
  func.func @transform_1(%arg0: i32) -> (i32, i32, i32) {
    %c0_i32 = arith.constant 0 : i32
    %c0_i32_0 = arith.constant 0 : i32
    %c0_i32_1 = arith.constant 0 : i32
    return %arg0, %c0_i32, %c0_i32_0 : i32, i32, i32
  }
  func.func @transform_2(%arg0: i32) -> (i32, i32) {
    %c0_i32 = arith.constant 0 : i32
    %c0_i32_0 = arith.constant 0 : i32
    %c0_i32_1 = arith.constant 0 : i32
    return %c0_i32, %c0_i32_0 : i32, i32
  }
  func.func @transform_3(%arg0: i32) -> (i32, i32) {
    %c0_i32 = arith.constant 0 : i32
    %c0_i32_0 = arith.constant 0 : i32
    %c0_i32_1 = arith.constant 0 : i32
    return %c0_i32, %c0_i32_0 : i32, i32
  }
  func.func @transform_4(%arg0: i32) -> (i32, i32) {
    %c0_i32 = arith.constant 0 : i32
    %c0_i32_0 = arith.constant 0 : i32
    %c0_i32_1 = arith.constant 0 : i32
    return %c0_i32, %c0_i32_0 : i32, i32
  }
  func.func @transform_5(%arg0: i32) -> (i32, i32, i32) {
    %c0_i32 = arith.constant 0 : i32
    %c0_i32_0 = arith.constant 0 : i32
    %c0_i32_1 = arith.constant 0 : i32
    %c0_i32_2 = arith.constant 0 : i32
    return %c0_i32, %c0_i32_0, %c0_i32_1 : i32, i32, i32
  }
  func.func @transform_6(%arg0: i32) -> (i32, i32) {
    %c0_i32 = arith.constant 0 : i32
    %c0_i32_0 = arith.constant 0 : i32
    %c0_i32_1 = arith.constant 0 : i32
    return %c0_i32, %c0_i32_0 : i32, i32
  }
  func.func @transform_7(%arg0: i32) -> (i32, i32) {
    %c0_i32 = arith.constant 0 : i32
    %c0_i32_0 = arith.constant 0 : i32
    %c0_i32_1 = arith.constant 0 : i32
    return %c0_i32, %c0_i32_0 : i32, i32
  }
  func.func @transform_8(%arg0: i32) -> (i32, i32) {
    %c0_i32 = arith.constant 0 : i32
    %c0_i32_0 = arith.constant 0 : i32
    %c0_i32_1 = arith.constant 0 : i32
    return %c0_i32, %c0_i32_0 : i32, i32
  }
  func.func @transform_9(%arg0: i32) -> (i32, i32, i32) {
    %c0_i32 = arith.constant 0 : i32
    %c0_i32_0 = arith.constant 0 : i32
    %c0_i32_1 = arith.constant 0 : i32
    %c0_i32_2 = arith.constant 0 : i32
    return %c0_i32, %c0_i32_0, %c0_i32_1 : i32, i32, i32
  }
  func.func @transform_10(%arg0: i32) -> (i32, i32) {
    %c0_i32 = arith.constant 0 : i32
    %c0_i32_0 = arith.constant 0 : i32
    %c0_i32_1 = arith.constant 0 : i32
    return %c0_i32, %c0_i32_0 : i32, i32
  }
  func.func @transform_11(%arg0: i32) -> (i32, i32, i32) {
    %c0_i32 = arith.constant 0 : i32
    %c0_i32_0 = arith.constant 0 : i32
    %c0_i32_1 = arith.constant 0 : i32
    return %arg0, %c0_i32, %c0_i32_0 : i32, i32, i32
  }
}

</mosaic_0001>

<llo_original>
// kernel: adaptive_instance_norm.1
$region0: #{adaptive_instance_norm.1}
  #allocation0 [shape = 'u32[]', space=smem, size = 0x4, offset = 0x4, fixed_abs, tag = 'smem constant byte address 0x4 - core index']
  #allocation1 [shape = 'u32[144,128]{1,0:T(1,128)}', space=vmem, size = 0x12000, scoped, tag = 'internal scratch']
  %s0 = inlined_call_operand.vmem [shape: f32[2,4,256], index: 0, kind: input, shape index: {}]
  %s1 = inlined_call_operand.vmem [shape: f32[2,4,144], index: 1, kind: input, shape index: {}]
  %s2 = inlined_call_operand.vmem [shape: f32[144,1], index: 2, kind: input, shape index: {}]
  %s3 = inlined_call_operand.vmem [shape: bf16[4,4], index: 3, kind: input, shape index: {}]
  %s4 = inlined_call_operand.vmem [shape: f32[4,1], index: 4, kind: input, shape index: {}]
  %s5 = inlined_call_operand.vmem [shape: bf16[9,8,4], index: 5, kind: input, shape index: {}]
  %s6 = inlined_call_operand.vmem [shape: f32[8,1], index: 6, kind: input, shape index: {}]
  %s7 = inlined_call_operand.vmem [shape: bf16[4,8], index: 7, kind: input, shape index: {}]
  %s8 = inlined_call_operand.vmem [shape: f32[4,1], index: 8, kind: input, shape index: {}]
  %s9 = inlined_call_operand.vmem [shape: bf16[9,8,4], index: 9, kind: input, shape index: {}]
  %s10 = inlined_call_operand.vmem [shape: f32[8,1], index: 10, kind: input, shape index: {}]
  %s11 = inlined_call_operand.vmem [shape: f32[2,4,256], index: 11, kind: output, shape index: {}]
  %s12 = sld [smem:[#allocation0]]
  $region77: #{adaptive_instance_norm.1} parent=0
    _
  %s14 = ssub.s32 1, %s12
  %s15 = scalar_select 0, %s14, %s12
  loop: start=0, step=1, limit=4
  $region2: #{adaptive_instance_norm.1} parent=0 // loop_pre_header
    _
  $region3: #{adaptive_instance_norm.1} parent=0 // loop_header
    %s17 = sphi 0, %s21
    %p18 = scmp.ge.s32.totalorder %s17, 4
    %s27 = sphi 0, %s29
    %s30 = sphi 0, %s27
    %s31 = sphi 0, %s30
    %s47 = sphi 0, %s31
    %s53 = sphi 0, %s55
    %s56 = sphi 0, %s53
    %s57 = sphi 0, %s56
    %s73 = sphi 0, %s57
    %s77 = sphi 0, %s77
    %s79 = sphi 0, %s77
    %s80 = sphi 0, %s79
    %s94 = sphi 0, %s80
    %s98 = sphi 0, %s98
    %s100 = sphi 0, %s98
    %s101 = sphi 0, %s100
    %s115 = sphi 0, %s101
    %s119 = sphi 0, %s119
    %s121 = sphi 0, %s119
    %s122 = sphi 0, %s121
    %s136 = sphi 0, %s122
    %s140 = sphi 0, %s140
    %s142 = sphi 0, %s140
    %s143 = sphi 0, %s142
    %s157 = sphi 0, %s143
    %s161 = sphi 0, %s161
    %s163 = sphi 0, %s161
    %s164 = sphi 0, %s163
    %s178 = sphi 0, %s164
    %s182 = sphi 0, %s182
    %s184 = sphi 0, %s182
    %s185 = sphi 0, %s184
    %s199 = sphi 0, %s185
    %s203 = sphi 0, %s203
    %s205 = sphi 0, %s203
    %s206 = sphi 0, %s205
    %s220 = sphi 0, %s206
    %s224 = sphi 0, %s224
    %s226 = sphi 0, %s224
    %s227 = sphi 0, %s226
    %s241 = sphi 0, %s227
    %s245 = sphi 0, %s245
    %s247 = sphi 0, %s245
    %s248 = sphi 0, %s247
    %s262 = sphi 0, %s248
    %s268 = sphi 0, %s270
    %s271 = sphi 0, %s268
    %s272 = sphi 0, %s271
    %s288 = sphi 0, %s272
  $region4: #{adaptive_instance_norm.1} parent=0 // loop_header_branch
    %20 = sbr.rel (%p18) target = $region8
  $region5: #{adaptive_instance_norm.1} parent=0 // loop_body
    %s22 = ssub.s32 %s17, 1
    %s23 = ssub.s32 %s17, 2
    %s24 = sadd.s32 %s17, 1
    %s25 = ssub.s32 %s17, %s24
    %p26 = scmp.eq.s32.totalorder %s25, 0
    %s28 = sadd.s32 %s27, 1
    %s29 = scalar_select %p26, %s27, %s28
    %p32 = pneg %p26
    %p33 = scmp.eq.s32.totalorder %s17, 1
    %p34 = por %p32, %p33
    %p35 = scmp.ne.s32.totalorder %s27, %s30
    %p36 = scmp.eq.s32.totalorder %s17, 0
    %p37 = por %p35, %p36
    %p38 = scmp.ne.s32.totalorder %s27, %s30
    %p39 = scmp.eq.s32.totalorder %s22, 1
    %p40 = por %p38, %p39
    %p41 = scmp.ne.s32.totalorder %s30, %s31
    %p42 = scmp.eq.s32.totalorder %s22, 0
    %p43 = por %p41, %p42
    %p44 = scmp.ne.s32.totalorder %s30, %s31
    %p45 = scmp.eq.s32.totalorder %s23, 1
    %p46 = por %p44, %p45
    %p48 = scmp.ne.s32.totalorder %s31, %s47
    %p49 = scmp.eq.s32.totalorder %s23, 0
    %p50 = por %p48, %p49
    %s51 = ssub.s32 %s17, %s24
    %p52 = scmp.eq.s32.totalorder %s51, 0
    %s54 = sadd.s32 %s53, 1
    %s55 = scalar_select %p52, %s53, %s54
    %p58 = pneg %p52
    %p59 = scmp.eq.s32.totalorder %s17, 1
    %p60 = por %p58, %p59
    %p61 = scmp.ne.s32.totalorder %s53, %s56
    %p62 = scmp.eq.s32.totalorder %s17, 0
    %p63 = por %p61, %p62
    %p64 = scmp.ne.s32.totalorder %s53, %s56
    %p65 = scmp.eq.s32.totalorder %s22, 1
    %p66 = por %p64, %p65
    %p67 = scmp.ne.s32.totalorder %s56, %s57
    %p68 = scmp.eq.s32.totalorder %s22, 0
    %p69 = por %p67, %p68
    %p70 = scmp.ne.s32.totalorder %s56, %s57
    %p71 = scmp.eq.s32.totalorder %s23, 1
    %p72 = por %p70, %p71
    %p74 = scmp.ne.s32.totalorder %s57, %s73
    %p75 = scmp.eq.s32.totalorder %s23, 0
    %p76 = por %p74, %p75
    %s78 = sadd.s32 %s77, 1
    %p81 = scmp.eq.s32.totalorder %s17, 1
    %p82 = scmp.ne.s32.totalorder %s77, %s79
    %p83 = scmp.eq.s32.totalorder %s17, 0
    %p84 = por %p82, %p83
    %p85 = scmp.ne.s32.totalorder %s77, %s79
    %p86 = scmp.eq.s32.totalorder %s22, 1
    %p87 = por %p85, %p86
    %p88 = scmp.ne.s32.totalorder %s79, %s80
    %p89 = scmp.eq.s32.totalorder %s22, 0
    %p90 = por %p88, %p89
    %p91 = scmp.ne.s32.totalorder %s79, %s80
    %p92 = scmp.eq.s32.totalorder %s23, 1
    %p93 = por %p91, %p92
    %p95 = scmp.ne.s32.totalorder %s80, %s94
    %p96 = scmp.eq.s32.totalorder %s23, 0
    %p97 = por %p95, %p96
    %s99 = sadd.s32 %s98, 1
    %p102 = scmp.eq.s32.totalorder %s17, 1
    %p103 = scmp.ne.s32.totalorder %s98, %s100
    %p104 = scmp.eq.s32.totalorder %s17, 0
    %p105 = por %p103, %p104
    %p106 = scmp.ne.s32.totalorder %s98, %s100
    %p107 = scmp.eq.s32.totalorder %s22, 1
    %p108 = por %p106, %p107
    %p109 = scmp.ne.s32.totalorder %s100, %s101
    %p110 = scmp.eq.s32.totalorder %s22, 0
    %p111 = por %p109, %p110
    %p112 = scmp.ne.s32.totalorder %s100, %s101
    %p113 = scmp.eq.s32.totalorder %s23, 1
    %p114 = por %p112, %p113
    %p116 = scmp.ne.s32.totalorder %s101, %s115
    %p117 = scmp.eq.s32.totalorder %s23, 0
    %p118 = por %p116, %p117
    %s120 = sadd.s32 %s119, 1
    %p123 = scmp.eq.s32.totalorder %s17, 1
    %p124 = scmp.ne.s32.totalorder %s119, %s121
    %p125 = scmp.eq.s32.totalorder %s17, 0
    %p126 = por %p124, %p125
    %p127 = scmp.ne.s32.totalorder %s119, %s121
    %p128 = scmp.eq.s32.totalorder %s22, 1
    %p129 = por %p127, %p128
    %p130 = scmp.ne.s32.totalorder %s121, %s122
    %p131 = scmp.eq.s32.totalorder %s22, 0
    %p132 = por %p130, %p131
    %p133 = scmp.ne.s32.totalorder %s121, %s122
    %p134 = scmp.eq.s32.totalorder %s23, 1
    %p135 = por %p133, %p134
    %p137 = scmp.ne.s32.totalorder %s122, %s136
    %p138 = scmp.eq.s32.totalorder %s23, 0
    %p139 = por %p137, %p138
    %s141 = sadd.s32 %s140, 1
    %p144 = scmp.eq.s32.totalorder %s17, 1
    %p145 = scmp.ne.s32.totalorder %s140, %s142
    %p146 = scmp.eq.s32.totalorder %s17, 0
    %p147 = por %p145, %p146
    %p148 = scmp.ne.s32.totalorder %s140, %s142
    %p149 = scmp.eq.s32.totalorder %s22, 1
    %p150 = por %p148, %p149
    %p151 = scmp.ne.s32.totalorder %s142, %s143
    %p152 = scmp.eq.s32.totalorder %s22, 0
    %p153 = por %p151, %p152
    %p154 = scmp.ne.s32.totalorder %s142, %s143
    %p155 = scmp.eq.s32.totalorder %s23, 1
    %p156 = por %p154, %p155
    %p158 = scmp.ne.s32.totalorder %s143, %s157
    %p159 = scmp.eq.s32.totalorder %s23, 0
    %p160 = por %p158, %p159
    %s162 = sadd.s32 %s161, 1
    %p165 = scmp.eq.s32.totalorder %s17, 1
    %p166 = scmp.ne.s32.totalorder %s161, %s163
    %p167 = scmp.eq.s32.totalorder %s17, 0
    %p168 = por %p166, %p167
    %p169 = scmp.ne.s32.totalorder %s161, %s163
    %p170 = scmp.eq.s32.totalorder %s22, 1
    %p171 = por %p169, %p170
    %p172 = scmp.ne.s32.totalorder %s163, %s164
    %p173 = scmp.eq.s32.totalorder %s22, 0
    %p174 = por %p172, %p173
    %p175 = scmp.ne.s32.totalorder %s163, %s164
    %p176 = scmp.eq.s32.totalorder %s23, 1
    %p177 = por %p175, %p176
    %p179 = scmp.ne.s32.totalorder %s164, %s178
    %p180 = scmp.eq.s32.totalorder %s23, 0
    %p181 = por %p179, %p180
    %s183 = sadd.s32 %s182, 1
    %p186 = scmp.eq.s32.totalorder %s17, 1
    %p187 = scmp.ne.s32.totalorder %s182, %s184
    %p188 = scmp.eq.s32.totalorder %s17, 0
    %p189 = por %p187, %p188
    %p190 = scmp.ne.s32.totalorder %s182, %s184
    %p191 = scmp.eq.s32.totalorder %s22, 1
    %p192 = por %p190, %p191
    %p193 = scmp.ne.s32.totalorder %s184, %s185
    %p194 = scmp.eq.s32.totalorder %s22, 0
    %p195 = por %p193, %p194
    %p196 = scmp.ne.s32.totalorder %s184, %s185
    %p197 = scmp.eq.s32.totalorder %s23, 1
    %p198 = por %p196, %p197
    %p200 = scmp.ne.s32.totalorder %s185, %s199
    %p201 = scmp.eq.s32.totalorder %s23, 0
    %p202 = por %p200, %p201
    %s204 = sadd.s32 %s203, 1
    %p207 = scmp.eq.s32.totalorder %s17, 1
    %p208 = scmp.ne.s32.totalorder %s203, %s205
    %p209 = scmp.eq.s32.totalorder %s17, 0
    %p210 = por %p208, %p209
    %p211 = scmp.ne.s32.totalorder %s203, %s205
    %p212 = scmp.eq.s32.totalorder %s22, 1
    %p213 = por %p211, %p212
    %p214 = scmp.ne.s32.totalorder %s205, %s206
    %p215 = scmp.eq.s32.totalorder %s22, 0
    %p216 = por %p214, %p215
    %p217 = scmp.ne.s32.totalorder %s205, %s206
    %p218 = scmp.eq.s32.totalorder %s23, 1
    %p219 = por %p217, %p218
    %p221 = scmp.ne.s32.totalorder %s206, %s220
    %p222 = scmp.eq.s32.totalorder %s23, 0
    %p223 = por %p221, %p222
    %s225 = sadd.s32 %s224, 1
    %p228 = scmp.eq.s32.totalorder %s17, 1
    %p229 = scmp.ne.s32.totalorder %s224, %s226
    %p230 = scmp.eq.s32.totalorder %s17, 0
    %p231 = por %p229, %p230
    %p232 = scmp.ne.s32.totalorder %s224, %s226
    %p233 = scmp.eq.s32.totalorder %s22, 1
    %p234 = por %p232, %p233
    %p235 = scmp.ne.s32.totalorder %s226, %s227
    %p236 = scmp.eq.s32.totalorder %s22, 0
    %p237 = por %p235, %p236
    %p238 = scmp.ne.s32.totalorder %s226, %s227
    %p239 = scmp.eq.s32.totalorder %s23, 1
    %p240 = por %p238, %p239
    %p242 = scmp.ne.s32.totalorder %s227, %s241
    %p243 = scmp.eq.s32.totalorder %s23, 0
    %p244 = por %p242, %p243
    %s246 = sadd.s32 %s245, 1
    %p249 = scmp.eq.s32.totalorder %s17, 1
    %p250 = scmp.ne.s32.totalorder %s245, %s247
    %p251 = scmp.eq.s32.totalorder %s17, 0
    %p252 = por %p250, %p251
    %p253 = scmp.ne.s32.totalorder %s245, %s247
    %p254 = scmp.eq.s32.totalorder %s22, 1
    %p255 = por %p253, %p254
    %p256 = scmp.ne.s32.totalorder %s247, %s248
    %p257 = scmp.eq.s32.totalorder %s22, 0
    %p258 = por %p256, %p257
    %p259 = scmp.ne.s32.totalorder %s247, %s248
    %p260 = scmp.eq.s32.totalorder %s23, 1
    %p261 = por %p259, %p260
    %p263 = scmp.ne.s32.totalorder %s248, %s262
    %p264 = scmp.eq.s32.totalorder %s23, 0
    %p265 = por %p263, %p264
    %s266 = ssub.s32 %s17, %s24
    %p267 = scmp.eq.s32.totalorder %s266, 0
    %s269 = sadd.s32 %s268, 1
    %s270 = scalar_select %p267, %s268, %s269
    %p273 = pneg %p267
    %p274 = scmp.eq.s32.totalorder %s17, 1
    %p275 = por %p273, %p274
    %p276 = scmp.ne.s32.totalorder %s268, %s271
    %p277 = scmp.eq.s32.totalorder %s17, 0
    %p278 = por %p276, %p277
    %p279 = scmp.ne.s32.totalorder %s268, %s271
    %p280 = scmp.eq.s32.totalorder %s22, 1
    %p281 = por %p279, %p280
    %p282 = scmp.ne.s32.totalorder %s271, %s272
    %p283 = scmp.eq.s32.totalorder %s22, 0
    %p284 = por %p282, %p283
    %p285 = scmp.ne.s32.totalorder %s271, %s272
    %p286 = scmp.eq.s32.totalorder %s23, 1
    %p287 = por %p285, %p286
    %p289 = scmp.ne.s32.totalorder %s272, %s288
    %p290 = scmp.eq.s32.totalorder %s23, 0
    %p291 = por %p289, %p290
    %p292 = scmp.le.s32.totalorder 1, %s17
    %p293 = scmp.lt.s32.totalorder %s17, 3
    %p294 = pnand %p292, %p293
    %p295 = pneg %p294
    // Predicated region
    $region9: #{adaptive_instance_norm.1} parent=5 // pred_check
      _
    $region10: #{adaptive_instance_norm.1} parent=5 // pred_check_branch
      %297 = sbr.rel (%p294) target = $region12
    $region11: #{adaptive_instance_norm.1} parent=5 // pred_region
      %s298 = ssub.s32 %s17, 1
      // Predicated region
      $region13: #{adaptive_instance_norm.1} parent=11 // pred_check
        %p299 = pneg %p90
      $region14: #{adaptive_instance_norm.1} parent=11 // pred_check_branch
        %301 = sbr.rel (%p299) target = $region16
      $region15: #{adaptive_instance_norm.1} parent=11 // pred_region
        _
      $region16: #{adaptive_instance_norm.1} parent=11 // pred_fallthru
        _
      // Predicated region
      $region17: #{adaptive_instance_norm.1} parent=11 // pred_check
        %p302 = pneg %p111
      $region18: #{adaptive_instance_norm.1} parent=11 // pred_check_branch
        %304 = sbr.rel (%p302) target = $region20
      $region19: #{adaptive_instance_norm.1} parent=11 // pred_region
        _
      $region20: #{adaptive_instance_norm.1} parent=11 // pred_fallthru
        _
      // Predicated region
      $region21: #{adaptive_instance_norm.1} parent=11 // pred_check
        %p305 = pneg %p132
      $region22: #{adaptive_instance_norm.1} parent=11 // pred_check_branch
        %307 = sbr.rel (%p305) target = $region24
      $region23: #{adaptive_instance_norm.1} parent=11 // pred_region
        _
      $region24: #{adaptive_instance_norm.1} parent=11 // pred_fallthru
        _
      // Predicated region
      $region25: #{adaptive_instance_norm.1} parent=11 // pred_check
        %p308 = pneg %p153
      $region26: #{adaptive_instance_norm.1} parent=11 // pred_check_branch
        %310 = sbr.rel (%p308) target = $region28
      $region27: #{adaptive_instance_norm.1} parent=11 // pred_region
        _
      $region28: #{adaptive_instance_norm.1} parent=11 // pred_fallthru
        _
      // Predicated region
      $region29: #{adaptive_instance_norm.1} parent=11 // pred_check
        %p311 = pneg %p174
      $region30: #{adaptive_instance_norm.1} parent=11 // pred_check_branch
        %313 = sbr.rel (%p311) target = $region32
      $region31: #{adaptive_instance_norm.1} parent=11 // pred_region
        _
      $region32: #{adaptive_instance_norm.1} parent=11 // pred_fallthru
        _
      // Predicated region
      $region33: #{adaptive_instance_norm.1} parent=11 // pred_check
        %p314 = pneg %p195
      $region34: #{adaptive_instance_norm.1} parent=11 // pred_check_branch
        %316 = sbr.rel (%p314) target = $region36
      $region35: #{adaptive_instance_norm.1} parent=11 // pred_region
        _
      $region36: #{adaptive_instance_norm.1} parent=11 // pred_fallthru
        _
      // Predicated region
      $region37: #{adaptive_instance_norm.1} parent=11 // pred_check
        %p317 = pneg %p216
      $region38: #{adaptive_instance_norm.1} parent=11 // pred_check_branch
        %319 = sbr.rel (%p317) target = $region40
      $region39: #{adaptive_instance_norm.1} parent=11 // pred_region
        _
      $region40: #{adaptive_instance_norm.1} parent=11 // pred_fallthru
        _
      // Predicated region
      $region41: #{adaptive_instance_norm.1} parent=11 // pred_check
        %p320 = pneg %p237
      $region42: #{adaptive_instance_norm.1} parent=11 // pred_check_branch
        %322 = sbr.rel (%p320) target = $region44
      $region43: #{adaptive_instance_norm.1} parent=11 // pred_region
        _
      $region44: #{adaptive_instance_norm.1} parent=11 // pred_fallthru
        _
      // Predicated region
      $region45: #{adaptive_instance_norm.1} parent=11 // pred_check
        %p323 = pneg %p258
      $region46: #{adaptive_instance_norm.1} parent=11 // pred_check_branch
        %325 = sbr.rel (%p323) target = $region48
      $region47: #{adaptive_instance_norm.1} parent=11 // pred_region
        _
      $region48: #{adaptive_instance_norm.1} parent=11 // pred_fallthru
        _
    $region12: #{adaptive_instance_norm.1} parent=5 // pred_fallthru
      _
    %p326 = scmp.lt.s32.totalorder %s17, 2
    // Predicated region
    $region49: #{adaptive_instance_norm.1} parent=5 // pred_check
      %p327 = pneg %p326
    $region50: #{adaptive_instance_norm.1} parent=5 // pred_check_branch
      %329 = sbr.rel (%p327) target = $region52
    $region51: #{adaptive_instance_norm.1} parent=5 // pred_region
      // Predicated region
      $region53: #{adaptive_instance_norm.1} parent=51 // pred_check
        %p330 = pneg %p37
      $region54: #{adaptive_instance_norm.1} parent=51 // pred_check_branch
        %332 = sbr.rel (%p330) target = $region56
      $region55: #{adaptive_instance_norm.1} parent=51 // pred_region
        %p333 = scmp.lt.s32.totalorder %s17, 1
        %s334 = scalar_select %p333, %s17, 1
        %s335 = smul.addr %s334, 2
        %s336 = smul.addr %s335, 4
        %s337 = scalar_lea.vmem %s0, %s336
      $region56: #{adaptive_instance_norm.1} parent=51 // pred_fallthru
        _
      // Predicated region
      $region57: #{adaptive_instance_norm.1} parent=51 // pred_check
        %p338 = pneg %p63
      $region58: #{adaptive_instance_norm.1} parent=51 // pred_check_branch
        %340 = sbr.rel (%p338) target = $region60
      $region59: #{adaptive_instance_norm.1} parent=51 // pred_region
        %p341 = scmp.lt.s32.totalorder %s17, 1
        %s342 = scalar_select %p341, %s17, 1
        %s343 = smul.addr %s342, 2
        %s344 = smul.addr %s343, 4
        %s345 = scalar_lea.vmem %s1, %s344
      $region60: #{adaptive_instance_norm.1} parent=51 // pred_fallthru
        _
    $region52: #{adaptive_instance_norm.1} parent=5 // pred_fallthru
      _
    %p346 = scmp.le.s32.totalorder 1, %s17
    %p347 = scmp.lt.s32.totalorder %s17, 3
    %p348 = pnand %p346, %p347
    %p349 = pneg %p348
    // Predicated region
    $region61: #{adaptive_instance_norm.1} parent=5 // pred_check
      _
    $region62: #{adaptive_instance_norm.1} parent=5 // pred_check_branch
      %351 = sbr.rel (%p348) target = $region64
    $region63: #{adaptive_instance_norm.1} parent=5 // pred_region
      %s352 = ssub.s32 %s17, 1
      %p353 = scmp.lt.s32.totalorder %s22, 1
      %s354 = scalar_select %p353, %s22, 1
      %s355 = smul.addr %s354, 2
      %s356 = smul.addr %s355, 4
      %s357 = scalar_lea.vmem %s0, %s356
      %p358 = pneg %p43
      %p359 = pneg %p40
      %p360 = scmp.lt.s32.totalorder %s22, 1
      %s361 = scalar_select %p360, %s22, 1
      %s362 = smul.addr %s361, 2
      %s363 = smul.addr %s362, 4
      %s364 = scalar_lea.vmem %s1, %s363
      %p365 = pneg %p69
      %p366 = pneg %p66
      %p367 = pneg %p90
      %p368 = pneg %p87
      %p369 = pneg %p111
      %p370 = pneg %p108
      %p371 = pneg %p132
      %p372 = pneg %p129
      %p373 = pneg %p153
      %p374 = pneg %p150
      %p375 = pneg %p174
      %p376 = pneg %p171
      %p377 = pneg %p195
      %p378 = pneg %p192
      %p379 = pneg %p216
      %p380 = pneg %p213
      %p381 = pneg %p237
      %p382 = pneg %p234
      %p383 = pneg %p258
      %p384 = pneg %p255
      %p385 = pneg %p284
      %p386 = pneg %p281
      %p387 = scmp.lt.s32.totalorder %s22, 1
      %s388 = scalar_select %p387, %s22, 1
      %s389 = smul.addr %s388, 2
      %s390 = smul.addr %s389, 4
      %s391 = scalar_lea.vmem %s11, %s390
      %p392 = scmp.lt.s32.totalorder %s22, 1
      %s393 = scalar_select %p392, %s22, 1
      %s394 = smul.addr %s393, 2
      %s395 = smul.addr %s394, 4
      %s396 = scalar_lea.vmem %s0, %s395
      %p397 = scmp.lt.s32.totalorder %s22, 1
      %s398 = scalar_select %p397, %s22, 1
      %s399 = smul.addr %s398, 2
      %s400 = smul.addr %s399, 4
      %s401 = scalar_lea.vmem %s1, %s400
      %p402 = scmp.lt.s32.totalorder %s22, 1
      %s403 = scalar_select %p402, %s22, 1
      %s404 = smul.addr %s403, 2
      %s405 = smul.addr %s404, 4
      %s406 = scalar_lea.vmem %s11, %s405
      %v408 = vld [vmem:[%s401] sm:$0xff]
      %v410 = vcombine.high %v408, %v408
      %v412 = vpack.c.bf16 %v408, %v408
      %v413 = vpack.c.bf16 %v410, %v410
      %v414 = vld [vmem:[%s3] sm:$0x3]
      %v415 = vld [vmem:[%s4] sm:$0xf]
      %417 = vset.pattern.permute.xlu0 0
      %418 = vperm.xlu0 %417, %v415
      %v419 = vpop.permute.xlu0 %418
      %vm421 = vcmask 31744
      %v423 = vsel %vm421, %v414, 0
      %vm425 = vcmask 1041408
      %v427 = vsel %vm425, %v412, 0
      %v430 = vsel %vm425, %v413, 0
      %432 = vmatprep.subr.bf16.mxu0 %v430
      %433 = vmatpush1.bf16.msra.mxu0 %v427
      %434 = vmatprep.subr.bf16.mxu0 0
      %435 = vmatpush1.bf16.msra.mxu0 0
      %436 = vmatprep.subr.bf16.mxu0 0
      %437 = vmatpush1.bf16.msra.mxu0 0
      %438 = vmatprep.subr.bf16.mxu0 0
      %439 = vmatpush1.bf16.msra.mxu0 0
      %440 = vmatprep.subr.bf16.mxu0 0
      %441 = vmatpush1.bf16.msra.mxu0 0
      %442 = vmatprep.subr.bf16.mxu0 0
      %443 = vmatpush1.bf16.msra.mxu0 0
      %444 = vmatprep.subr.bf16.mxu0 0
      %445 = vmatpush1.bf16.msra.mxu0 0
      %446 = vmatprep.subr.bf16.mxu0 0
      %447 = vmatpush1.bf16.msra.mxu0 0
      %448 = vmatprep.subr.bf16.mxu0 0
      %449 = vmatpush1.bf16.msra.mxu0 0
      %450 = vmatprep.subr.bf16.mxu0 0
      %451 = vmatpush1.bf16.msra.mxu0 0
      %452 = vmatprep.subr.bf16.mxu0 0
      %453 = vmatpush1.bf16.msra.mxu0 0
      %454 = vmatprep.subr.bf16.mxu0 0
      %455 = vmatpush1.bf16.msra.mxu0 0
      %456 = vmatprep.subr.bf16.mxu0 0
      %457 = vmatpush1.bf16.msra.mxu0 0
      %458 = vmatprep.subr.bf16.mxu0 0
      %459 = vmatpush1.bf16.msra.mxu0 0
      %460 = vmatprep.subr.bf16.mxu0 0
      %461 = vmatpush1.bf16.msra.mxu0 0
      %462 = vmatprep.subr.bf16.mxu0 0
      %463 = vmatpush1.bf16.msra.mxu0 0
      %464 = vmatprep.mubr.bf16.mxu0 0
      %465 = vmatmul.mubr.bf16.gmra.mrb[0].mxu0 %v423
      %v466 = vpop.f32.mrb[0].mxu0
      %v467 = vadd.f32 %v419, %v466
      %v468 = vpop.f32.mrb[0].mxu0
      %v469 = vadd.f32 %v419, %v468
      %v470 = vpop.f32.mrb[0].mxu0
      %v471 = vpop.f32.mrb[0].mxu0
      %472 = vdwg.mxu0
      %v473 = vmax.f32 %v467, 0.0
      %v474 = vmax.f32 %v469, 0.0
      %v475 = vld [vmem:[%s5] sm:$0xf]
      %v476 = vld [vmem:[%s5 + $0x4] sm:$0xf]
      %v477 = vld [vmem:[%s5 + $0x8] sm:$0xf]
      %v478 = vld [vmem:[%s5 + $0xc] sm:$0xf]
      %v479 = vld [vmem:[%s5 + $0x10] sm:$0xf]
      %v480 = vld [vmem:[%s5 + $0x14] sm:$0xf]
      %v481 = vld [vmem:[%s5 + $0x18] sm:$0xf]
      %v482 = vld [vmem:[%s5 + $0x1c] sm:$0xf]
      %v483 = vld [vmem:[%s5 + $0x20] sm:$0xf]
      %v484 = vpack.c.bf16 %v473, %v473
      %v485 = vpack.c.bf16 %v474, %v474
      %488 = vrot.lane.b32.xlu0 %v473, 127
      %v489 = vpop.permute.xlu0 %488
      %490 = vrot.lane.b32.xlu0 %v474, 127
      %v491 = vpop.permute.xlu0 %490
      %vm492 = vcmask 1039360
      %v493 = vsel %vm492, %v489, %v491
      %496 = vrot.lane.b32.xlu0 %v473, 15
      %v497 = vpop.permute.xlu0 %496
      %vm499 = vcmask 121856
      %v500 = vsel %vm499, %v491, %v497
      %v501 = vpack.c.bf16 %v493, %v493
      %v502 = vpack.c.bf16 %v500, %v500
      %v504 = vsel %vm421, %v476, 0
      %v507 = vsel %vm425, %v501, 0
      %v510 = vsel %vm425, %v502, 0
      %512 = vmatprep.subr.bf16.mxu0 %v510
      %513 = vmatpush1.bf16.msra.mxu0 %v507
      %514 = vmatprep.subr.bf16.mxu0 0
      %515 = vmatpush1.bf16.msra.mxu0 0
      %516 = vmatprep.subr.bf16.mxu0 0
      %517 = vmatpush1.bf16.msra.mxu0 0
      %518 = vmatprep.subr.bf16.mxu0 0
      %519 = vmatpush1.bf16.msra.mxu0 0
      %520 = vmatprep.subr.bf16.mxu0 0
      %521 = vmatpush1.bf16.msra.mxu0 0
      %522 = vmatprep.subr.bf16.mxu0 0
      %523 = vmatpush1.bf16.msra.mxu0 0
      %524 = vmatprep.subr.bf16.mxu0 0
      %525 = vmatpush1.bf16.msra.mxu0 0
      %526 = vmatprep.subr.bf16.mxu0 0
      %527 = vmatpush1.bf16.msra.mxu0 0
      %528 = vmatprep.subr.bf16.mxu0 0
      %529 = vmatpush1.bf16.msra.mxu0 0
      %530 = vmatprep.subr.bf16.mxu0 0
      %531 = vmatpush1.bf16.msra.mxu0 0
      %532 = vmatprep.subr.bf16.mxu0 0
      %533 = vmatpush1.bf16.msra.mxu0 0
      %534 = vmatprep.subr.bf16.mxu0 0
      %535 = vmatpush1.bf16.msra.mxu0 0
      %536 = vmatprep.subr.bf16.mxu0 0
      %537 = vmatpush1.bf16.msra.mxu0 0
      %538 = vmatprep.subr.bf16.mxu0 0
      %539 = vmatpush1.bf16.msra.mxu0 0
      %540 = vmatprep.subr.bf16.mxu0 0
      %541 = vmatpush1.bf16.msra.mxu0 0
      %542 = vmatprep.subr.bf16.mxu0 0
      %543 = vmatpush1.bf16.msra.mxu0 0
      %544 = vmatprep.mubr.bf16.mxu0 0
      %545 = vmatmul.mubr.bf16.gmra.mrb[0].mxu0 %v504
      %v546 = vpop.f32.mrb[0].mxu0
      %v547 = vadd.f32 0.0, %v546
      %v548 = vpop.f32.mrb[0].mxu0
      %v549 = vadd.f32 0.0, %v548
      %v550 = vpop.f32.mrb[0].mxu0
      %v551 = vpop.f32.mrb[0].mxu0
      %552 = vdwg.mxu0
      %v554 = vsel %vm421, %v475, 0
      %v557 = vsel %vm425, %v484, 0
      %v560 = vsel %vm425, %v485, 0
      %562 = vmatprep.subr.bf16.mxu0 %v560
      %563 = vmatpush1.bf16.msra.mxu0 %v557
      %564 = vmatprep.subr.bf16.mxu0 0
      %565 = vmatpush1.bf16.msra.mxu0 0
      %566 = vmatprep.subr.bf16.mxu0 0
      %567 = vmatpush1.bf16.msra.mxu0 0
      %568 = vmatprep.subr.bf16.mxu0 0
      %569 = vmatpush1.bf16.msra.mxu0 0
      %570 = vmatprep.subr.bf16.mxu0 0
      %571 = vmatpush1.bf16.msra.mxu0 0
      %572 = vmatprep.subr.bf16.mxu0 0
      %573 = vmatpush1.bf16.msra.mxu0 0
      %574 = vmatprep.subr.bf16.mxu0 0
      %575 = vmatpush1.bf16.msra.mxu0 0
      %576 = vmatprep.subr.bf16.mxu0 0
      %577 = vmatpush1.bf16.msra.mxu0 0
      %578 = vmatprep.subr.bf16.mxu0 0
      %579 = vmatpush1.bf16.msra.mxu0 0
      %580 = vmatprep.subr.bf16.mxu0 0
      %581 = vmatpush1.bf16.msra.mxu0 0
      %582 = vmatprep.subr.bf16.mxu0 0
      %583 = vmatpush1.bf16.msra.mxu0 0
      %584 = vmatprep.subr.bf16.mxu0 0
      %585 = vmatpush1.bf16.msra.mxu0 0
      %586 = vmatprep.subr.bf16.mxu0 0
      %587 = vmatpush1.bf16.msra.mxu0 0
      %588 = vmatprep.subr.bf16.mxu0 0
      %589 = vmatpush1.bf16.msra.mxu0 0
      %590 = vmatprep.subr.bf16.mxu0 0
      %591 = vmatpush1.bf16.msra.mxu0 0
      %592 = vmatprep.subr.bf16.mxu0 0
      %593 = vmatpush1.bf16.msra.mxu0 0
      %594 = vmatprep.mubr.bf16.mxu0 0
      %595 = vmatmul.mubr.bf16.gmra.mrb[0].mxu0 %v554
      %v596 = vpop.f32.mrb[0].mxu0
      %v597 = vadd.f32 %v547, %v596
      %v598 = vpop.f32.mrb[0].mxu0
      %v599 = vadd.f32 %v549, %v598
      %v600 = vpop.f32.mrb[0].mxu0
      %v601 = vpop.f32.mrb[0].mxu0
      %602 = vdwg.mxu0
      %603 = vrot.lane.b32.xlu0 %v473, 126
      %v604 = vpop.permute.xlu0 %603
      %605 = vrot.lane.b32.xlu0 %v474, 126
      %v606 = vpop.permute.xlu0 %605
      %vm607 = vcmask 1031168
      %v608 = vsel %vm607, %v604, %v606
      %611 = vrot.lane.b32.xlu0 %v473, 14
      %v612 = vpop.permute.xlu0 %611
      %vm614 = vcmask 113664
      %v615 = vsel %vm614, %v606, %v612
      %v616 = vpack.c.bf16 %v608, %v608
      %v617 = vpack.c.bf16 %v615, %v615
      %v619 = vsel %vm421, %v477, 0
      %v622 = vsel %vm425, %v616, 0
      %v625 = vsel %vm425, %v617, 0
      %627 = vmatprep.subr.bf16.mxu0 %v625
      %628 = vmatpush1.bf16.msra.mxu0 %v622
      %629 = vmatprep.subr.bf16.mxu0 0
      %630 = vmatpush1.bf16.msra.mxu0 0
      %631 = vmatprep.subr.bf16.mxu0 0
      %632 = vmatpush1.bf16.msra.mxu0 0
      %633 = vmatprep.subr.bf16.mxu0 0
      %634 = vmatpush1.bf16.msra.mxu0 0
      %635 = vmatprep.subr.bf16.mxu0 0
      %636 = vmatpush1.bf16.msra.mxu0 0
      %637 = vmatprep.subr.bf16.mxu0 0
      %638 = vmatpush1.bf16.msra.mxu0 0
      %639 = vmatprep.subr.bf16.mxu0 0
      %640 = vmatpush1.bf16.msra.mxu0 0
      %641 = vmatprep.subr.bf16.mxu0 0
      %642 = vmatpush1.bf16.msra.mxu0 0
      %643 = vmatprep.subr.bf16.mxu0 0
      %644 = vmatpush1.bf16.msra.mxu0 0
      %645 = vmatprep.subr.bf16.mxu0 0
      %646 = vmatpush1.bf16.msra.mxu0 0
      %647 = vmatprep.subr.bf16.mxu0 0
      %648 = vmatpush1.bf16.msra.mxu0 0
      %649 = vmatprep.subr.bf16.mxu0 0
      %650 = vmatpush1.bf16.msra.mxu0 0
      %651 = vmatprep.subr.bf16.mxu0 0
      %652 = vmatpush1.bf16.msra.mxu0 0
      %653 = vmatprep.subr.bf16.mxu0 0
      %654 = vmatpush1.bf16.msra.mxu0 0
      %655 = vmatprep.subr.bf16.mxu0 0
      %656 = vmatpush1.bf16.msra.mxu0 0
      %657 = vmatprep.subr.bf16.mxu0 0
      %658 = vmatpush1.bf16.msra.mxu0 0
      %659 = vmatprep.mubr.bf16.mxu0 0
      %660 = vmatmul.mubr.bf16.gmra.mrb[0].mxu0 %v619
      %v661 = vpop.f32.mrb[0].mxu0
      %v662 = vadd.f32 0.0, %v661
      %v663 = vpop.f32.mrb[0].mxu0
      %v664 = vadd.f32 0.0, %v663
      %v665 = vpop.f32.mrb[0].mxu0
      %v666 = vpop.f32.mrb[0].mxu0
      %667 = vdwg.mxu0
      %v668 = vadd.f32 %v597, %v662
      %v669 = vadd.f32 %v599, %v664
      %670 = vrot.lane.b32.xlu0 %v473, 116
      %v671 = vpop.permute.xlu0 %670
      %672 = vrot.lane.b32.xlu0 %v474, 116
      %v673 = vpop.permute.xlu0 %672
      %vm674 = vcmask 949248
      %v675 = vsel %vm674, %v671, %v673
      %678 = vrot.lane.b32.xlu0 %v473, 4
      %v679 = vpop.permute.xlu0 %678
      %v681 = vsel %vm421, %v673, %v679
      %v682 = vpack.c.bf16 %v675, %v675
      %v683 = vpack.c.bf16 %v681, %v681
      %v685 = vsel %vm421, %v478, 0
      %v688 = vsel %vm425, %v682, 0
      %v691 = vsel %vm425, %v683, 0
      %693 = vmatprep.subr.bf16.mxu0 %v691
      %694 = vmatpush1.bf16.msra.mxu0 %v688
      %695 = vmatprep.subr.bf16.mxu0 0
      %696 = vmatpush1.bf16.msra.mxu0 0
      %697 = vmatprep.subr.bf16.mxu0 0
      %698 = vmatpush1.bf16.msra.mxu0 0
      %699 = vmatprep.subr.bf16.mxu0 0
      %700 = vmatpush1.bf16.msra.mxu0 0
      %701 = vmatprep.subr.bf16.mxu0 0
      %702 = vmatpush1.bf16.msra.mxu0 0
      %703 = vmatprep.subr.bf16.mxu0 0
      %704 = vmatpush1.bf16.msra.mxu0 0
      %705 = vmatprep.subr.bf16.mxu0 0
      %706 = vmatpush1.bf16.msra.mxu0 0
      %707 = vmatprep.subr.bf16.mxu0 0
      %708 = vmatpush1.bf16.msra.mxu0 0
      %709 = vmatprep.subr.bf16.mxu0 0
      %710 = vmatpush1.bf16.msra.mxu0 0
      %711 = vmatprep.subr.bf16.mxu0 0
      %712 = vmatpush1.bf16.msra.mxu0 0
      %713 = vmatprep.subr.bf16.mxu0 0
      %714 = vmatpush1.bf16.msra.mxu0 0
      %715 = vmatprep.subr.bf16.mxu0 0
      %716 = vmatpush1.bf16.msra.mxu0 0
      %717 = vmatprep.subr.bf16.mxu0 0
      %718 = vmatpush1.bf16.msra.mxu0 0
      %719 = vmatprep.subr.bf16.mxu0 0
      %720 = vmatpush1.bf16.msra.mxu0 0
      %721 = vmatprep.subr.bf16.mxu0 0
      %722 = vmatpush1.bf16.msra.mxu0 0
      %723 = vmatprep.subr.bf16.mxu0 0
      %724 = vmatpush1.bf16.msra.mxu0 0
      %725 = vmatprep.mubr.bf16.mxu0 0
      %726 = vmatmul.mubr.bf16.gmra.mrb[0].mxu0 %v685
      %v727 = vpop.f32.mrb[0].mxu0
      %v728 = vadd.f32 0.0, %v727
      %v729 = vpop.f32.mrb[0].mxu0
      %v730 = vadd.f32 0.0, %v729
      %v731 = vpop.f32.mrb[0].mxu0
      %v732 = vpop.f32.mrb[0].mxu0
      %733 = vdwg.mxu0
      %v734 = vadd.f32 %v668, %v728
      %v735 = vadd.f32 %v669, %v730
      %736 = vrot.lane.b32.xlu0 %v473, 115
      %v737 = vpop.permute.xlu0 %736
      %738 = vrot.lane.b32.xlu0 %v474, 115
      %v739 = vpop.permute.xlu0 %738
      %vm740 = vcmask 941056
      %v741 = vsel %vm740, %v737, %v739
      %744 = vrot.lane.b32.xlu0 %v473, 3
      %v745 = vpop.permute.xlu0 %744
      %vm747 = vcmask 23552
      %v748 = vsel %vm747, %v739, %v745
      %v749 = vpack.c.bf16 %v741, %v741
      %v750 = vpack.c.bf16 %v748, %v748
      %v752 = vsel %vm421, %v479, 0
      %v755 = vsel %vm425, %v749, 0
      %v758 = vsel %vm425, %v750, 0
      %760 = vmatprep.subr.bf16.mxu0 %v758
      %761 = vmatpush1.bf16.msra.mxu0 %v755
      %762 = vmatprep.subr.bf16.mxu0 0
      %763 = vmatpush1.bf16.msra.mxu0 0
      %764 = vmatprep.subr.bf16.mxu0 0
      %765 = vmatpush1.bf16.msra.mxu0 0
      %766 = vmatprep.subr.bf16.mxu0 0
      %767 = vmatpush1.bf16.msra.mxu0 0
      %768 = vmatprep.subr.bf16.mxu0 0
      %769 = vmatpush1.bf16.msra.mxu0 0
      %770 = vmatprep.subr.bf16.mxu0 0
      %771 = vmatpush1.bf16.msra.mxu0 0
      %772 = vmatprep.subr.bf16.mxu0 0
      %773 = vmatpush1.bf16.msra.mxu0 0
      %774 = vmatprep.subr.bf16.mxu0 0
      %775 = vmatpush1.bf16.msra.mxu0 0
      %776 = vmatprep.subr.bf16.mxu0 0
      %777 = vmatpush1.bf16.msra.mxu0 0
      %778 = vmatprep.subr.bf16.mxu0 0
      %779 = vmatpush1.bf16.msra.mxu0 0
      %780 = vmatprep.subr.bf16.mxu0 0
      %781 = vmatpush1.bf16.msra.mxu0 0
      %782 = vmatprep.subr.bf16.mxu0 0
      %783 = vmatpush1.bf16.msra.mxu0 0
      %784 = vmatprep.subr.bf16.mxu0 0
      %785 = vmatpush1.bf16.msra.mxu0 0
      %786 = vmatprep.subr.bf16.mxu0 0
      %787 = vmatpush1.bf16.msra.mxu0 0
      %788 = vmatprep.subr.bf16.mxu0 0
      %789 = vmatpush1.bf16.msra.mxu0 0
      %790 = vmatprep.subr.bf16.mxu0 0
      %791 = vmatpush1.bf16.msra.mxu0 0
      %792 = vmatprep.mubr.bf16.mxu0 0
      %793 = vmatmul.mubr.bf16.gmra.mrb[0].mxu0 %v752
      %v794 = vpop.f32.mrb[0].mxu0
      %v795 = vadd.f32 0.0, %v794
      %v796 = vpop.f32.mrb[0].mxu0
      %v797 = vadd.f32 0.0, %v796
      %v798 = vpop.f32.mrb[0].mxu0
      %v799 = vpop.f32.mrb[0].mxu0
      %800 = vdwg.mxu0
      %v801 = vadd.f32 %v734, %v795
      %v802 = vadd.f32 %v735, %v797
      %803 = vrot.lane.b32.xlu0 %v473, 114
      %v804 = vpop.permute.xlu0 %803
      %805 = vrot.lane.b32.xlu0 %v474, 114
      %v806 = vpop.permute.xlu0 %805
      %vm807 = vcmask 932864
      %v808 = vsel %vm807, %v804, %v806
      %811 = vrot.lane.b32.xlu0 %v473, 2
      %v812 = vpop.permute.xlu0 %811
      %vm814 = vcmask 15360
      %v815 = vsel %vm814, %v806, %v812
      %v816 = vpack.c.bf16 %v808, %v808
      %v817 = vpack.c.bf16 %v815, %v815
      %v819 = vsel %vm421, %v480, 0
      %v822 = vsel %vm425, %v816, 0
      %v825 = vsel %vm425, %v817, 0
      %827 = vmatprep.subr.bf16.mxu0 %v825
      %828 = vmatpush1.bf16.msra.mxu0 %v822
      %829 = vmatprep.subr.bf16.mxu0 0
      %830 = vmatpush1.bf16.msra.mxu0 0
      %831 = vmatprep.subr.bf16.mxu0 0
      %832 = vmatpush1.bf16.msra.mxu0 0
      %833 = vmatprep.subr.bf16.mxu0 0
      %834 = vmatpush1.bf16.msra.mxu0 0
      %835 = vmatprep.subr.bf16.mxu0 0
      %836 = vmatpush1.bf16.msra.mxu0 0
      %837 = vmatprep.subr.bf16.mxu0 0
      %838 = vmatpush1.bf16.msra.mxu0 0
      %839 = vmatprep.subr.bf16.mxu0 0
      %840 = vmatpush1.bf16.msra.mxu0 0
      %841 = vmatprep.subr.bf16.mxu0 0
      %842 = vmatpush1.bf16.msra.mxu0 0
      %843 = vmatprep.subr.bf16.mxu0 0
      %844 = vmatpush1.bf16.msra.mxu0 0
      %845 = vmatprep.subr.bf16.mxu0 0
      %846 = vmatpush1.bf16.msra.mxu0 0
      %847 = vmatprep.subr.bf16.mxu0 0
      %848 = vmatpush1.bf16.msra.mxu0 0
      %849 = vmatprep.subr.bf16.mxu0 0
      %850 = vmatpush1.bf16.msra.mxu0 0
      %851 = vmatprep.subr.bf16.mxu0 0
      %852 = vmatpush1.bf16.msra.mxu0 0
      %853 = vmatprep.subr.bf16.mxu0 0
      %854 = vmatpush1.bf16.msra.mxu0 0
      %855 = vmatprep.subr.bf16.mxu0 0
      %856 = vmatpush1.bf16.msra.mxu0 0
      %857 = vmatprep.subr.bf16.mxu0 0
      %858 = vmatpush1.bf16.msra.mxu0 0
      %859 = vmatprep.mubr.bf16.mxu0 0
      %860 = vmatmul.mubr.bf16.gmra.mrb[0].mxu0 %v819
      %v861 = vpop.f32.mrb[0].mxu0
      %v862 = vadd.f32 0.0, %v861
      %v863 = vpop.f32.mrb[0].mxu0
      %v864 = vadd.f32 0.0, %v863
      %v865 = vpop.f32.mrb[0].mxu0
      %v866 = vpop.f32.mrb[0].mxu0
      %867 = vdwg.mxu0
      %v868 = vadd.f32 %v801, %v862
      %v869 = vadd.f32 %v802, %v864
      %870 = vrot.lane.b32.xlu0 %v473, 104
      %v871 = vpop.permute.xlu0 %870
      %872 = vrot.lane.b32.xlu0 %v474, 104
      %v873 = vpop.permute.xlu0 %872
      %vm874 = vcmask 850944
      %v875 = vsel %vm874, %v871, %v873
      %877 = vrot.lane.b32.xlu0 %v473, 120
      %v878 = vpop.permute.xlu0 %877
      %vm880 = vcmask 982016
      %v881 = vsel %vm880, %v875, %v878
      %v882 = vpack.c.bf16 %v881, %v881
      %v883 = vpack.c.bf16 %v878, %v878
      %v885 = vsel %vm421, %v481, 0
      %v888 = vsel %vm425, %v882, 0
      %v891 = vsel %vm425, %v883, 0
      %893 = vmatprep.subr.bf16.mxu0 %v891
      %894 = vmatpush1.bf16.msra.mxu0 %v888
      %895 = vmatprep.subr.bf16.mxu0 0
      %896 = vmatpush1.bf16.msra.mxu0 0
      %897 = vmatprep.subr.bf16.mxu0 0
      %898 = vmatpush1.bf16.msra.mxu0 0
      %899 = vmatprep.subr.bf16.mxu0 0
      %900 = vmatpush1.bf16.msra.mxu0 0
      %901 = vmatprep.subr.bf16.mxu0 0
      %902 = vmatpush1.bf16.msra.mxu0 0
      %903 = vmatprep.subr.bf16.mxu0 0
      %904 = vmatpush1.bf16.msra.mxu0 0
      %905 = vmatprep.subr.bf16.mxu0 0
      %906 = vmatpush1.bf16.msra.mxu0 0
      %907 = vmatprep.subr.bf16.mxu0 0
      %908 = vmatpush1.bf16.msra.mxu0 0
      %909 = vmatprep.subr.bf16.mxu0 0
      %910 = vmatpush1.bf16.msra.mxu0 0
      %911 = vmatprep.subr.bf16.mxu0 0
      %912 = vmatpush1.bf16.msra.mxu0 0
      %913 = vmatprep.subr.bf16.mxu0 0
      %914 = vmatpush1.bf16.msra.mxu0 0
      %915 = vmatprep.subr.bf16.mxu0 0
      %916 = vmatpush1.bf16.msra.mxu0 0
      %917 = vmatprep.subr.bf16.mxu0 0
      %918 = vmatpush1.bf16.msra.mxu0 0
      %919 = vmatprep.subr.bf16.mxu0 0
      %920 = vmatpush1.bf16.msra.mxu0 0
      %921 = vmatprep.subr.bf16.mxu0 0
      %922 = vmatpush1.bf16.msra.mxu0 0
      %923 = vmatprep.subr.bf16.mxu0 0
      %924 = vmatpush1.bf16.msra.mxu0 0
      %925 = vmatprep.mubr.bf16.mxu0 0
      %926 = vmatmul.mubr.bf16.gmra.mrb[0].mxu0 %v885
      %v927 = vpop.f32.mrb[0].mxu0
      %v928 = vadd.f32 0.0, %v927
      %v929 = vpop.f32.mrb[0].mxu0
      %v930 = vadd.f32 0.0, %v929
      %v931 = vpop.f32.mrb[0].mxu0
      %v932 = vpop.f32.mrb[0].mxu0
      %933 = vdwg.mxu0
      %v934 = vadd.f32 %v868, %v928
      %v935 = vadd.f32 %v869, %v930
      %936 = vrot.lane.b32.xlu0 %v473, 103
      %v937 = vpop.permute.xlu0 %936
      %938 = vrot.lane.b32.xlu0 %v474, 103
      %v939 = vpop.permute.xlu0 %938
      %vm940 = vcmask 842752
      %v941 = vsel %vm940, %v937, %v939
      %943 = vrot.lane.b32.xlu0 %v473, 119
      %v944 = vpop.permute.xlu0 %943
      %vm946 = vcmask 973824
      %v947 = vsel %vm946, %v941, %v944
      %v948 = vpack.c.bf16 %v947, %v947
      %v949 = vpack.c.bf16 %v944, %v944
      %v951 = vsel %vm421, %v482, 0
      %v954 = vsel %vm425, %v948, 0
      %v957 = vsel %vm425, %v949, 0
      %959 = vmatprep.subr.bf16.mxu0 %v957
      %960 = vmatpush1.bf16.msra.mxu0 %v954
      %961 = vmatprep.subr.bf16.mxu0 0
      %962 = vmatpush1.bf16.msra.mxu0 0
      %963 = vmatprep.subr.bf16.mxu0 0
      %964 = vmatpush1.bf16.msra.mxu0 0
      %965 = vmatprep.subr.bf16.mxu0 0
      %966 = vmatpush1.bf16.msra.mxu0 0
      %967 = vmatprep.subr.bf16.mxu0 0
      %968 = vmatpush1.bf16.msra.mxu0 0
      %969 = vmatprep.subr.bf16.mxu0 0
      %970 = vmatpush1.bf16.msra.mxu0 0
      %971 = vmatprep.subr.bf16.mxu0 0
      %972 = vmatpush1.bf16.msra.mxu0 0
      %973 = vmatprep.subr.bf16.mxu0 0
      %974 = vmatpush1.bf16.msra.mxu0 0
      %975 = vmatprep.subr.bf16.mxu0 0
      %976 = vmatpush1.bf16.msra.mxu0 0
      %977 = vmatprep.subr.bf16.mxu0 0
      %978 = vmatpush1.bf16.msra.mxu0 0
      %979 = vmatprep.subr.bf16.mxu0 0
      %980 = vmatpush1.bf16.msra.mxu0 0
      %981 = vmatprep.subr.bf16.mxu0 0
      %982 = vmatpush1.bf16.msra.mxu0 0
      %983 = vmatprep.subr.bf16.mxu0 0
      %984 = vmatpush1.bf16.msra.mxu0 0
      %985 = vmatprep.subr.bf16.mxu0 0
      %986 = vmatpush1.bf16.msra.mxu0 0
      %987 = vmatprep.subr.bf16.mxu0 0
      %988 = vmatpush1.bf16.msra.mxu0 0
      %989 = vmatprep.subr.bf16.mxu0 0
      %990 = vmatpush1.bf16.msra.mxu0 0
      %991 = vmatprep.mubr.bf16.mxu0 0
      %992 = vmatmul.mubr.bf16.gmra.mrb[0].mxu0 %v951
      %v993 = vpop.f32.mrb[0].mxu0
      %v994 = vadd.f32 0.0, %v993
      %v995 = vpop.f32.mrb[0].mxu0
      %v996 = vadd.f32 0.0, %v995
      %v997 = vpop.f32.mrb[0].mxu0
      %v998 = vpop.f32.mrb[0].mxu0
      %999 = vdwg.mxu0
      %v1000 = vadd.f32 %v934, %v994
      %v1001 = vadd.f32 %v935, %v996
      %1002 = vrot.lane.b32.xlu0 %v473, 102
      %v1003 = vpop.permute.xlu0 %1002
      %1004 = vrot.lane.b32.xlu0 %v474, 102
      %v1005 = vpop.permute.xlu0 %1004
      %vm1006 = vcmask 834560
      %v1007 = vsel %vm1006, %v1003, %v1005
      %1009 = vrot.lane.b32.xlu0 %v473, 118
      %v1010 = vpop.permute.xlu0 %1009
      %vm1012 = vcmask 965632
      %v1013 = vsel %vm1012, %v1007, %v1010
      %v1014 = vpack.c.bf16 %v1013, %v1013
      %v1015 = vpack.c.bf16 %v1010, %v1010
      %v1017 = vsel %vm421, %v483, 0
      %v1020 = vsel %vm425, %v1014, 0
      %v1023 = vsel %vm425, %v1015, 0
      %1025 = vmatprep.subr.bf16.mxu0 %v1023
      %1026 = vmatpush1.bf16.msra.mxu0 %v1020
      %1027 = vmatprep.subr.bf16.mxu0 0
      %1028 = vmatpush1.bf16.msra.mxu0 0
      %1029 = vmatprep.subr.bf16.mxu0 0
      %1030 = vmatpush1.bf16.msra.mxu0 0
      %1031 = vmatprep.subr.bf16.mxu0 0
      %1032 = vmatpush1.bf16.msra.mxu0 0
      %1033 = vmatprep.subr.bf16.mxu0 0
      %1034 = vmatpush1.bf16.msra.mxu0 0
      %1035 = vmatprep.subr.bf16.mxu0 0
      %1036 = vmatpush1.bf16.msra.mxu0 0
      %1037 = vmatprep.subr.bf16.mxu0 0
      %1038 = vmatpush1.bf16.msra.mxu0 0
      %1039 = vmatprep.subr.bf16.mxu0 0
      %1040 = vmatpush1.bf16.msra.mxu0 0
      %1041 = vmatprep.subr.bf16.mxu0 0
      %1042 = vmatpush1.bf16.msra.mxu0 0
      %1043 = vmatprep.subr.bf16.mxu0 0
      %1044 = vmatpush1.bf16.msra.mxu0 0
      %1045 = vmatprep.subr.bf16.mxu0 0
      %1046 = vmatpush1.bf16.msra.mxu0 0
      %1047 = vmatprep.subr.bf16.mxu0 0
      %1048 = vmatpush1.bf16.msra.mxu0 0
      %1049 = vmatprep.subr.bf16.mxu0 0
      %1050 = vmatpush1.bf16.msra.mxu0 0
      %1051 = vmatprep.subr.bf16.mxu0 0
      %1052 = vmatpush1.bf16.msra.mxu0 0
      %1053 = vmatprep.subr.bf16.mxu0 0
      %1054 = vmatpush1.bf16.msra.mxu0 0
      %1055 = vmatprep.subr.bf16.mxu0 0
      %1056 = vmatpush1.bf16.msra.mxu0 0
      %1057 = vmatprep.mubr.bf16.mxu0 0
      %1058 = vmatmul.mubr.bf16.gmra.mrb[0].mxu0 %v1017
      %v1059 = vpop.f32.mrb[0].mxu0
      %v1060 = vadd.f32 0.0, %v1059
      %v1061 = vpop.f32.mrb[0].mxu0
      %v1062 = vadd.f32 0.0, %v1061
      %v1063 = vpop.f32.mrb[0].mxu0
      %v1064 = vpop.f32.mrb[0].mxu0
      %1065 = vdwg.mxu0
      %v1066 = vadd.f32 %v1000, %v1060
      %v1067 = vadd.f32 %v1001, %v1062
      %v1068 = vld [vmem:[%s6] sm:$0xff]
      %1070 = vset.pattern.permute.xlu0 0
      %1071 = vperm.xlu0 %1070, %v1068
      %v1072 = vpop.permute.xlu0 %1071
      %v1074 = vadd.f32 %v1066, %v1072
      %v1075 = vadd.f32 %v1067, %v1072
      %v1076 = vmax.f32 %v1074, 0.0
      %v1077 = vmax.f32 %v1075, 0.0
      %vm1078 = vcmp.gt.f32.partialorder %v1076, 0.0
      %vm1079 = vcmp.gt.f32.partialorder %v1077, 0.0
      %v1080 = vmin.f32 %v1076, 0.0
      %v1081 = vmin.f32 %v1077, 0.0
      %v1082 = vmul.f32 %v1080, 1.442695
      %v1083 = vpow.pop %v1082
      %v1084 = vmul.f32 %v1081, 1.442695
      %v1085 = vpow.pop %v1084
      %v1086 = vsub.f32 %v1083, 1.0
      %v1087 = vsub.f32 %v1085, 1.0
      %v1088 = vmul.f32 %v1086, 1.6732632
      %v1089 = vmul.f32 %v1087, 1.6732632
      %v1090 = vsel %vm1078, %v1076, %v1088
      %v1091 = vsel %vm1079, %v1077, %v1089
      %v1092 = vmul.f32 %v1090, 1.050701
      %v1093 = vmul.f32 %v1091, 1.050701
      %v1094 = vld [vmem:[%s7] sm:$0x3]
      %v1095 = vpack.c.bf16 %v1092, %v1092
      %v1096 = vpack.c.bf16 %v1093, %v1093
      %v1097 = vld [vmem:[%s8] sm:$0xf]
      %1099 = vset.pattern.permute.xlu0 0
      %1100 = vperm.xlu0 %1099, %v1097
      %v1101 = vpop.permute.xlu0 %1100
      %vm1103 = vcmask 64512
      %v1105 = vsel %vm1103, %v1094, 0
      %vm1107 = vcmask 1043456
      %v1109 = vsel %vm1107, %v1095, 0
      %v1112 = vsel %vm1107, %v1096, 0
      %1114 = vmatprep.subr.bf16.mxu0 %v1112
      %1115 = vmatpush1.bf16.msra.mxu0 %v1109
      %1116 = vmatprep.subr.bf16.mxu0 0
      %1117 = vmatpush1.bf16.msra.mxu0 0
      %1118 = vmatprep.subr.bf16.mxu0 0
      %1119 = vmatpush1.bf16.msra.mxu0 0
      %1120 = vmatprep.subr.bf16.mxu0 0
      %1121 = vmatpush1.bf16.msra.mxu0 0
      %1122 = vmatprep.subr.bf16.mxu0 0
      %1123 = vmatpush1.bf16.msra.mxu0 0
      %1124 = vmatprep.subr.bf16.mxu0 0
      %1125 = vmatpush1.bf16.msra.mxu0 0
      %1126 = vmatprep.subr.bf16.mxu0 0
      %1127 = vmatpush1.bf16.msra.mxu0 0
      %1128 = vmatprep.subr.bf16.mxu0 0
      %1129 = vmatpush1.bf16.msra.mxu0 0
      %1130 = vmatprep.subr.bf16.mxu0 0
      %1131 = vmatpush1.bf16.msra.mxu0 0
      %1132 = vmatprep.subr.bf16.mxu0 0
      %1133 = vmatpush1.bf16.msra.mxu0 0
      %1134 = vmatprep.subr.bf16.mxu0 0
      %1135 = vmatpush1.bf16.msra.mxu0 0
      %1136 = vmatprep.subr.bf16.mxu0 0
      %1137 = vmatpush1.bf16.msra.mxu0 0
      %1138 = vmatprep.subr.bf16.mxu0 0
      %1139 = vmatpush1.bf16.msra.mxu0 0
      %1140 = vmatprep.subr.bf16.mxu0 0
      %1141 = vmatpush1.bf16.msra.mxu0 0
      %1142 = vmatprep.subr.bf16.mxu0 0
      %1143 = vmatpush1.bf16.msra.mxu0 0
      %1144 = vmatprep.subr.bf16.mxu0 0
      %1145 = vmatpush1.bf16.msra.mxu0 0
      %1146 = vmatprep.mubr.bf16.mxu0 0
      %1147 = vmatmul.mubr.bf16.gmra.mrb[0].mxu0 %v1105
      %v1148 = vpop.f32.mrb[0].mxu0
      %v1149 = vadd.f32 %v1101, %v1148
      %v1150 = vpop.f32.mrb[0].mxu0
      %v1151 = vadd.f32 %v1101, %v1150
      %v1152 = vpop.f32.mrb[0].mxu0
      %v1153 = vpop.f32.mrb[0].mxu0
      %1154 = vdwg.mxu0
      %v1155 = vmax.f32 %v1149, 0.0
      %v1156 = vmax.f32 %v1151, 0.0
      %v1157 = vld [vmem:[%s9] sm:$0xf]
      %v1158 = vld [vmem:[%s9 + $0x4] sm:$0xf]
      %v1159 = vld [vmem:[%s9 + $0x8] sm:$0xf]
      %v1160 = vld [vmem:[%s9 + $0xc] sm:$0xf]
      %v1161 = vld [vmem:[%s9 + $0x10] sm:$0xf]
      %v1162 = vld [vmem:[%s9 + $0x14] sm:$0xf]
      %v1163 = vld [vmem:[%s9 + $0x18] sm:$0xf]
      %v1164 = vld [vmem:[%s9 + $0x1c] sm:$0xf]
      %v1165 = vld [vmem:[%s9 + $0x20] sm:$0xf]
      %v1166 = vpack.c.bf16 %v1155, %v1155
      %v1167 = vpack.c.bf16 %v1156, %v1156
      %1170 = vrot.lane.b32.xlu0 %v1155, 127
      %v1171 = vpop.permute.xlu0 %1170
      %1172 = vrot.lane.b32.xlu0 %v1156, 127
      %v1173 = vpop.permute.xlu0 %1172
      %v1174 = vsel %vm492, %v1171, %v1173
      %1177 = vrot.lane.b32.xlu0 %v1155, 15
      %v1178 = vpop.permute.xlu0 %1177
      %v1180 = vsel %vm499, %v1173, %v1178
      %v1181 = vpack.c.bf16 %v1174, %v1174
      %v1182 = vpack.c.bf16 %v1180, %v1180
      %v1184 = vsel %vm421, %v1158, 0
      %v1187 = vsel %vm425, %v1181, 0
      %v1190 = vsel %vm425, %v1182, 0
      %1192 = vmatprep.subr.bf16.mxu0 %v1190
      %1193 = vmatpush1.bf16.msra.mxu0 %v1187
      %1194 = vmatprep.subr.bf16.mxu0 0
      %1195 = vmatpush1.bf16.msra.mxu0 0
      %1196 = vmatprep.subr.bf16.mxu0 0
      %1197 = vmatpush1.bf16.msra.mxu0 0
      %1198 = vmatprep.subr.bf16.mxu0 0
      %1199 = vmatpush1.bf16.msra.mxu0 0
      %1200 = vmatprep.subr.bf16.mxu0 0
      %1201 = vmatpush1.bf16.msra.mxu0 0
      %1202 = vmatprep.subr.bf16.mxu0 0
      %1203 = vmatpush1.bf16.msra.mxu0 0
      %1204 = vmatprep.subr.bf16.mxu0 0
      %1205 = vmatpush1.bf16.msra.mxu0 0
      %1206 = vmatprep.subr.bf16.mxu0 0
      %1207 = vmatpush1.bf16.msra.mxu0 0
      %1208 = vmatprep.subr.bf16.mxu0 0
      %1209 = vmatpush1.bf16.msra.mxu0 0
      %1210 = vmatprep.subr.bf16.mxu0 0
      %1211 = vmatpush1.bf16.msra.mxu0 0
      %1212 = vmatprep.subr.bf16.mxu0 0
      %1213 = vmatpush1.bf16.msra.mxu0 0
      %1214 = vmatprep.subr.bf16.mxu0 0
      %1215 = vmatpush1.bf16.msra.mxu0 0
      %1216 = vmatprep.subr.bf16.mxu0 0
      %1217 = vmatpush1.bf16.msra.mxu0 0
      %1218 = vmatprep.subr.bf16.mxu0 0
      %1219 = vmatpush1.bf16.msra.mxu0 0
      %1220 = vmatprep.subr.bf16.mxu0 0
      %1221 = vmatpush1.bf16.msra.mxu0 0
      %1222 = vmatprep.subr.bf16.mxu0 0
      %1223 = vmatpush1.bf16.msra.mxu0 0
      %1224 = vmatprep.mubr.bf16.mxu0 0
      %1225 = vmatmul.mubr.bf16.gmra.mrb[0].mxu0 %v1184
      %v1226 = vpop.f32.mrb[0].mxu0
      %v1227 = vadd.f32 0.0, %v1226
      %v1228 = vpop.f32.mrb[0].mxu0
      %v1229 = vadd.f32 0.0, %v1228
      %v1230 = vpop.f32.mrb[0].mxu0
      %v1231 = vpop.f32.mrb[0].mxu0
      %1232 = vdwg.mxu0
      %v1234 = vsel %vm421, %v1157, 0
      %v1237 = vsel %vm425, %v1166, 0
      %v1240 = vsel %vm425, %v1167, 0
      %1242 = vmatprep.subr.bf16.mxu0 %v1240
      %1243 = vmatpush1.bf16.msra.mxu0 %v1237
      %1244 = vmatprep.subr.bf16.mxu0 0
      %1245 = vmatpush1.bf16.msra.mxu0 0
      %1246 = vmatprep.subr.bf16.mxu0 0
      %1247 = vmatpush1.bf16.msra.mxu0 0
      %1248 = vmatprep.subr.bf16.mxu0 0
      %1249 = vmatpush1.bf16.msra.mxu0 0
      %1250 = vmatprep.subr.bf16.mxu0 0
      %1251 = vmatpush1.bf16.msra.mxu0 0
      %1252 = vmatprep.subr.bf16.mxu0 0
      %1253 = vmatpush1.bf16.msra.mxu0 0
      %1254 = vmatprep.subr.bf16.mxu0 0
      %1255 = vmatpush1.bf16.msra.mxu0 0
      %1256 = vmatprep.subr.bf16.mxu0 0
      %1257 = vmatpush1.bf16.msra.mxu0 0
      %1258 = vmatprep.subr.bf16.mxu0 0
      %1259 = vmatpush1.bf16.msra.mxu0 0
      %1260 = vmatprep.subr.bf16.mxu0 0
      %1261 = vmatpush1.bf16.msra.mxu0 0
      %1262 = vmatprep.subr.bf16.mxu0 0
      %1263 = vmatpush1.bf16.msra.mxu0 0
      %1264 = vmatprep.subr.bf16.mxu0 0
      %1265 = vmatpush1.bf16.msra.mxu0 0
      %1266 = vmatprep.subr.bf16.mxu0 0
      %1267 = vmatpush1.bf16.msra.mxu0 0
      %1268 = vmatprep.subr.bf16.mxu0 0
      %1269 = vmatpush1.bf16.msra.mxu0 0
      %1270 = vmatprep.subr.bf16.mxu0 0
      %1271 = vmatpush1.bf16.msra.mxu0 0
      %1272 = vmatprep.subr.bf16.mxu0 0
      %1273 = vmatpush1.bf16.msra.mxu0 0
      %1274 = vmatprep.mubr.bf16.mxu0 0
      %1275 = vmatmul.mubr.bf16.gmra.mrb[0].mxu0 %v1234
      %v1276 = vpop.f32.mrb[0].mxu0
      %v1277 = vadd.f32 %v1227, %v1276
      %v1278 = vpop.f32.mrb[0].mxu0
      %v1279 = vadd.f32 %v1229, %v1278
      %v1280 = vpop.f32.mrb[0].mxu0
      %v1281 = vpop.f32.mrb[0].mxu0
      %1282 = vdwg.mxu0
      %1283 = vrot.lane.b32.xlu0 %v1155, 126
      %v1284 = vpop.permute.xlu0 %1283
      %1285 = vrot.lane.b32.xlu0 %v1156, 126
      %v1286 = vpop.permute.xlu0 %1285
      %v1287 = vsel %vm607, %v1284, %v1286
      %1290 = vrot.lane.b32.xlu0 %v1155, 14
      %v1291 = vpop.permute.xlu0 %1290
      %v1293 = vsel %vm614, %v1286, %v1291
      %v1294 = vpack.c.bf16 %v1287, %v1287
      %v1295 = vpack.c.bf16 %v1293, %v1293
      %v1297 = vsel %vm421, %v1159, 0
      %v1300 = vsel %vm425, %v1294, 0
      %v1303 = vsel %vm425, %v1295, 0
      %1305 = vmatprep.subr.bf16.mxu0 %v1303
      %1306 = vmatpush1.bf16.msra.mxu0 %v1300
      %1307 = vmatprep.subr.bf16.mxu0 0
      %1308 = vmatpush1.bf16.msra.mxu0 0
      %1309 = vmatprep.subr.bf16.mxu0 0
      %1310 = vmatpush1.bf16.msra.mxu0 0
      %1311 = vmatprep.subr.bf16.mxu0 0
      %1312 = vmatpush1.bf16.msra.mxu0 0
      %1313 = vmatprep.subr.bf16.mxu0 0
      %1314 = vmatpush1.bf16.msra.mxu0 0
      %1315 = vmatprep.subr.bf16.mxu0 0
      %1316 = vmatpush1.bf16.msra.mxu0 0
      %1317 = vmatprep.subr.bf16.mxu0 0
      %1318 = vmatpush1.bf16.msra.mxu0 0
      %1319 = vmatprep.subr.bf16.mxu0 0
      %1320 = vmatpush1.bf16.msra.mxu0 0
      %1321 = vmatprep.subr.bf16.mxu0 0
      %1322 = vmatpush1.bf16.msra.mxu0 0
      %1323 = vmatprep.subr.bf16.mxu0 0
      %1324 = vmatpush1.bf16.msra.mxu0 0
      %1325 = vmatprep.subr.bf16.mxu0 0
      %1326 = vmatpush1.bf16.msra.mxu0 0
      %1327 = vmatprep.subr.bf16.mxu0 0
      %1328 = vmatpush1.bf16.msra.mxu0 0
      %1329 = vmatprep.subr.bf16.mxu0 0
      %1330 = vmatpush1.bf16.msra.mxu0 0
      %1331 = vmatprep.subr.bf16.mxu0 0
      %1332 = vmatpush1.bf16.msra.mxu0 0
      %1333 = vmatprep.subr.bf16.mxu0 0
      %1334 = vmatpush1.bf16.msra.mxu0 0
      %1335 = vmatprep.subr.bf16.mxu0 0
      %1336 = vmatpush1.bf16.msra.mxu0 0
      %1337 = vmatprep.mubr.bf16.mxu0 0
      %1338 = vmatmul.mubr.bf16.gmra.mrb[0].mxu0 %v1297
      %v1339 = vpop.f32.mrb[0].mxu0
      %v1340 = vadd.f32 0.0, %v1339
      %v1341 = vpop.f32.mrb[0].mxu0
      %v1342 = vadd.f32 0.0, %v1341
      %v1343 = vpop.f32.mrb[0].mxu0
      %v1344 = vpop.f32.mrb[0].mxu0
      %1345 = vdwg.mxu0
      %v1346 = vadd.f32 %v1277, %v1340
      %v1347 = vadd.f32 %v1279, %v1342
      %1348 = vrot.lane.b32.xlu0 %v1155, 116
      %v1349 = vpop.permute.xlu0 %1348
      %1350 = vrot.lane.b32.xlu0 %v1156, 116
      %v1351 = vpop.permute.xlu0 %1350
      %v1352 = vsel %vm674, %v1349, %v1351
      %1355 = vrot.lane.b32.xlu0 %v1155, 4
      %v1356 = vpop.permute.xlu0 %1355
      %v1358 = vsel %vm421, %v1351, %v1356
      %v1359 = vpack.c.bf16 %v1352, %v1352
      %v1360 = vpack.c.bf16 %v1358, %v1358
      %v1362 = vsel %vm421, %v1160, 0
      %v1365 = vsel %vm425, %v1359, 0
      %v1368 = vsel %vm425, %v1360, 0
      %1370 = vmatprep.subr.bf16.mxu0 %v1368
      %1371 = vmatpush1.bf16.msra.mxu0 %v1365
      %1372 = vmatprep.subr.bf16.mxu0 0
      %1373 = vmatpush1.bf16.msra.mxu0 0
      %1374 = vmatprep.subr.bf16.mxu0 0
      %1375 = vmatpush1.bf16.msra.mxu0 0
      %1376 = vmatprep.subr.bf16.mxu0 0
      %1377 = vmatpush1.bf16.msra.mxu0 0
      %1378 = vmatprep.subr.bf16.mxu0 0
      %1379 = vmatpush1.bf16.msra.mxu0 0
      %1380 = vmatprep.subr.bf16.mxu0 0
      %1381 = vmatpush1.bf16.msra.mxu0 0
      %1382 = vmatprep.subr.bf16.mxu0 0
      %1383 = vmatpush1.bf16.msra.mxu0 0
      %1384 = vmatprep.subr.bf16.mxu0 0
      %1385 = vmatpush1.bf16.msra.mxu0 0
      %1386 = vmatprep.subr.bf16.mxu0 0
      %1387 = vmatpush1.bf16.msra.mxu0 0
      %1388 = vmatprep.subr.bf16.mxu0 0
      %1389 = vmatpush1.bf16.msra.mxu0 0
      %1390 = vmatprep.subr.bf16.mxu0 0
      %1391 = vmatpush1.bf16.msra.mxu0 0
      %1392 = vmatprep.subr.bf16.mxu0 0
      %1393 = vmatpush1.bf16.msra.mxu0 0
      %1394 = vmatprep.subr.bf16.mxu0 0
      %1395 = vmatpush1.bf16.msra.mxu0 0
      %1396 = vmatprep.subr.bf16.mxu0 0
      %1397 = vmatpush1.bf16.msra.mxu0 0
      %1398 = vmatprep.subr.bf16.mxu0 0
      %1399 = vmatpush1.bf16.msra.mxu0 0
      %1400 = vmatprep.subr.bf16.mxu0 0
      %1401 = vmatpush1.bf16.msra.mxu0 0
      %1402 = vmatprep.mubr.bf16.mxu0 0
      %1403 = vmatmul.mubr.bf16.gmra.mrb[0].mxu0 %v1362
      %v1404 = vpop.f32.mrb[0].mxu0
      %v1405 = vadd.f32 0.0, %v1404
      %v1406 = vpop.f32.mrb[0].mxu0
      %v1407 = vadd.f32 0.0, %v1406
      %v1408 = vpop.f32.mrb[0].mxu0
      %v1409 = vpop.f32.mrb[0].mxu0
      %1410 = vdwg.mxu0
      %v1411 = vadd.f32 %v1346, %v1405
      %v1412 = vadd.f32 %v1347, %v1407
      %1413 = vrot.lane.b32.xlu0 %v1155, 115
      %v1414 = vpop.permute.xlu0 %1413
      %1415 = vrot.lane.b32.xlu0 %v1156, 115
      %v1416 = vpop.permute.xlu0 %1415
      %v1417 = vsel %vm740, %v1414, %v1416
      %1420 = vrot.lane.b32.xlu0 %v1155, 3
      %v1421 = vpop.permute.xlu0 %1420
      %v1423 = vsel %vm747, %v1416, %v1421
      %v1424 = vpack.c.bf16 %v1417, %v1417
      %v1425 = vpack.c.bf16 %v1423, %v1423
      %v1427 = vsel %vm421, %v1161, 0
      %v1430 = vsel %vm425, %v1424, 0
      %v1433 = vsel %vm425, %v1425, 0
      %1435 = vmatprep.subr.bf16.mxu0 %v1433
      %1436 = vmatpush1.bf16.msra.mxu0 %v1430
      %1437 = vmatprep.subr.bf16.mxu0 0
      %1438 = vmatpush1.bf16.msra.mxu0 0
      %1439 = vmatprep.subr.bf16.mxu0 0
      %1440 = vmatpush1.bf16.msra.mxu0 0
      %1441 = vmatprep.subr.bf16.mxu0 0
      %1442 = vmatpush1.bf16.msra.mxu0 0
      %1443 = vmatprep.subr.bf16.mxu0 0
      %1444 = vmatpush1.bf16.msra.mxu0 0
      %1445 = vmatprep.subr.bf16.mxu0 0
      %1446 = vmatpush1.bf16.msra.mxu0 0
      %1447 = vmatprep.subr.bf16.mxu0 0
      %1448 = vmatpush1.bf16.msra.mxu0 0
      %1449 = vmatprep.subr.bf16.mxu0 0
      %1450 = vmatpush1.bf16.msra.mxu0 0
      %1451 = vmatprep.subr.bf16.mxu0 0
      %1452 = vmatpush1.bf16.msra.mxu0 0
      %1453 = vmatprep.subr.bf16.mxu0 0
      %1454 = vmatpush1.bf16.msra.mxu0 0
      %1455 = vmatprep.subr.bf16.mxu0 0
      %1456 = vmatpush1.bf16.msra.mxu0 0
      %1457 = vmatprep.subr.bf16.mxu0 0
      %1458 = vmatpush1.bf16.msra.mxu0 0
      %1459 = vmatprep.subr.bf16.mxu0 0
      %1460 = vmatpush1.bf16.msra.mxu0 0
      %1461 = vmatprep.subr.bf16.mxu0 0
      %1462 = vmatpush1.bf16.msra.mxu0 0
      %1463 = vmatprep.subr.bf16.mxu0 0
      %1464 = vmatpush1.bf16.msra.mxu0 0
      %1465 = vmatprep.subr.bf16.mxu0 0
      %1466 = vmatpush1.bf16.msra.mxu0 0
      %1467 = vmatprep.mubr.bf16.mxu0 0
      %1468 = vmatmul.mubr.bf16.gmra.mrb[0].mxu0 %v1427
      %v1469 = vpop.f32.mrb[0].mxu0
      %v1470 = vadd.f32 0.0, %v1469
      %v1471 = vpop.f32.mrb[0].mxu0
      %v1472 = vadd.f32 0.0, %v1471
      %v1473 = vpop.f32.mrb[0].mxu0
      %v1474 = vpop.f32.mrb[0].mxu0
      %1475 = vdwg.mxu0
      %v1476 = vadd.f32 %v1411, %v1470
      %v1477 = vadd.f32 %v1412, %v1472
      %1478 = vrot.lane.b32.xlu0 %v1155, 114
      %v1479 = vpop.permute.xlu0 %1478
      %1480 = vrot.lane.b32.xlu0 %v1156, 114
      %v1481 = vpop.permute.xlu0 %1480
      %v1482 = vsel %vm807, %v1479, %v1481
      %1485 = vrot.lane.b32.xlu0 %v1155, 2
      %v1486 = vpop.permute.xlu0 %1485
      %v1488 = vsel %vm814, %v1481, %v1486
      %v1489 = vpack.c.bf16 %v1482, %v1482
      %v1490 = vpack.c.bf16 %v1488, %v1488
      %v1492 = vsel %vm421, %v1162, 0
      %v1495 = vsel %vm425, %v1489, 0
      %v1498 = vsel %vm425, %v1490, 0
      %1500 = vmatprep.subr.bf16.mxu0 %v1498
      %1501 = vmatpush1.bf16.msra.mxu0 %v1495
      %1502 = vmatprep.subr.bf16.mxu0 0
      %1503 = vmatpush1.bf16.msra.mxu0 0
      %1504 = vmatprep.subr.bf16.mxu0 0
      %1505 = vmatpush1.bf16.msra.mxu0 0
      %1506 = vmatprep.subr.bf16.mxu0 0
      %1507 = vmatpush1.bf16.msra.mxu0 0
      %1508 = vmatprep.subr.bf16.mxu0 0
      %1509 = vmatpush1.bf16.msra.mxu0 0
      %1510 = vmatprep.subr.bf16.mxu0 0
      %1511 = vmatpush1.bf16.msra.mxu0 0
      %1512 = vmatprep.subr.bf16.mxu0 0
      %1513 = vmatpush1.bf16.msra.mxu0 0
      %1514 = vmatprep.subr.bf16.mxu0 0
      %1515 = vmatpush1.bf16.msra.mxu0 0
      %1516 = vmatprep.subr.bf16.mxu0 0
      %1517 = vmatpush1.bf16.msra.mxu0 0
      %1518 = vmatprep.subr.bf16.mxu0 0
      %1519 = vmatpush1.bf16.msra.mxu0 0
      %1520 = vmatprep.subr.bf16.mxu0 0
      %1521 = vmatpush1.bf16.msra.mxu0 0
      %1522 = vmatprep.subr.bf16.mxu0 0
      %1523 = vmatpush1.bf16.msra.mxu0 0
      %1524 = vmatprep.subr.bf16.mxu0 0
      %1525 = vmatpush1.bf16.msra.mxu0 0
      %1526 = vmatprep.subr.bf16.mxu0 0
      %1527 = vmatpush1.bf16.msra.mxu0 0
      %1528 = vmatprep.subr.bf16.mxu0 0
      %1529 = vmatpush1.bf16.msra.mxu0 0
      %1530 = vmatprep.subr.bf16.mxu0 0
      %1531 = vmatpush1.bf16.msra.mxu0 0
      %1532 = vmatprep.mubr.bf16.mxu0 0
      %1533 = vmatmul.mubr.bf16.gmra.mrb[0].mxu0 %v1492
      %v1534 = vpop.f32.mrb[0].mxu0
      %v1535 = vadd.f32 0.0, %v1534
      %v1536 = vpop.f32.mrb[0].mxu0
      %v1537 = vadd.f32 0.0, %v1536
      %v1538 = vpop.f32.mrb[0].mxu0
      %v1539 = vpop.f32.mrb[0].mxu0
      %1540 = vdwg.mxu0
      %v1541 = vadd.f32 %v1476, %v1535
      %v1542 = vadd.f32 %v1477, %v1537
      %1543 = vrot.lane.b32.xlu0 %v1155, 104
      %v1544 = vpop.permute.xlu0 %1543
      %1545 = vrot.lane.b32.xlu0 %v1156, 104
      %v1546 = vpop.permute.xlu0 %1545
      %v1547 = vsel %vm874, %v1544, %v1546
      %1549 = vrot.lane.b32.xlu0 %v1155, 120
      %v1550 = vpop.permute.xlu0 %1549
      %v1552 = vsel %vm880, %v1547, %v1550
      %v1553 = vpack.c.bf16 %v1552, %v1552
      %v1554 = vpack.c.bf16 %v1550, %v1550
      %v1556 = vsel %vm421, %v1163, 0
      %v1559 = vsel %vm425, %v1553, 0
      %v1562 = vsel %vm425, %v1554, 0
      %1564 = vmatprep.subr.bf16.mxu0 %v1562
      %1565 = vmatpush1.bf16.msra.mxu0 %v1559
      %1566 = vmatprep.subr.bf16.mxu0 0
      %1567 = vmatpush1.bf16.msra.mxu0 0
      %1568 = vmatprep.subr.bf16.mxu0 0
      %1569 = vmatpush1.bf16.msra.mxu0 0
      %1570 = vmatprep.subr.bf16.mxu0 0
      %1571 = vmatpush1.bf16.msra.mxu0 0
      %1572 = vmatprep.subr.bf16.mxu0 0
      %1573 = vmatpush1.bf16.msra.mxu0 0
      %1574 = vmatprep.subr.bf16.mxu0 0
      %1575 = vmatpush1.bf16.msra.mxu0 0
      %1576 = vmatprep.subr.bf16.mxu0 0
      %1577 = vmatpush1.bf16.msra.mxu0 0
      %1578 = vmatprep.subr.bf16.mxu0 0
      %1579 = vmatpush1.bf16.msra.mxu0 0
      %1580 = vmatprep.subr.bf16.mxu0 0
      %1581 = vmatpush1.bf16.msra.mxu0 0
      %1582 = vmatprep.subr.bf16.mxu0 0
      %1583 = vmatpush1.bf16.msra.mxu0 0
      %1584 = vmatprep.subr.bf16.mxu0 0
      %1585 = vmatpush1.bf16.msra.mxu0 0
      %1586 = vmatprep.subr.bf16.mxu0 0
      %1587 = vmatpush1.bf16.msra.mxu0 0
      %1588 = vmatprep.subr.bf16.mxu0 0
      %1589 = vmatpush1.bf16.msra.mxu0 0
      %1590 = vmatprep.subr.bf16.mxu0 0
      %1591 = vmatpush1.bf16.msra.mxu0 0
      %1592 = vmatprep.subr.bf16.mxu0 0
      %1593 = vmatpush1.bf16.msra.mxu0 0
      %1594 = vmatprep.subr.bf16.mxu0 0
      %1595 = vmatpush1.bf16.msra.mxu0 0
      %1596 = vmatprep.mubr.bf16.mxu0 0
      %1597 = vmatmul.mubr.bf16.gmra.mrb[0].mxu0 %v1556
      %v1598 = vpop.f32.mrb[0].mxu0
      %v1599 = vadd.f32 0.0, %v1598
      %v1600 = vpop.f32.mrb[0].mxu0
      %v1601 = vadd.f32 0.0, %v1600
      %v1602 = vpop.f32.mrb[0].mxu0
      %v1603 = vpop.f32.mrb[0].mxu0
      %1604 = vdwg.mxu0
      %v1605 = vadd.f32 %v1541, %v1599
      %v1606 = vadd.f32 %v1542, %v1601
      %1607 = vrot.lane.b32.xlu0 %v1155, 103
      %v1608 = vpop.permute.xlu0 %1607
      %1609 = vrot.lane.b32.xlu0 %v1156, 103
      %v1610 = vpop.permute.xlu0 %1609
      %v1611 = vsel %vm940, %v1608, %v1610
      %1613 = vrot.lane.b32.xlu0 %v1155, 119
      %v1614 = vpop.permute.xlu0 %1613
      %v1616 = vsel %vm946, %v1611, %v1614
      %v1617 = vpack.c.bf16 %v1616, %v1616
      %v1618 = vpack.c.bf16 %v1614, %v1614
      %v1620 = vsel %vm421, %v1164, 0
      %v1623 = vsel %vm425, %v1617, 0
      %v1626 = vsel %vm425, %v1618, 0
      %1628 = vmatprep.subr.bf16.mxu0 %v1626
      %1629 = vmatpush1.bf16.msra.mxu0 %v1623
      %1630 = vmatprep.subr.bf16.mxu0 0
      %1631 = vmatpush1.bf16.msra.mxu0 0
      %1632 = vmatprep.subr.bf16.mxu0 0
      %1633 = vmatpush1.bf16.msra.mxu0 0
      %1634 = vmatprep.subr.bf16.mxu0 0
      %1635 = vmatpush1.bf16.msra.mxu0 0
      %1636 = vmatprep.subr.bf16.mxu0 0
      %1637 = vmatpush1.bf16.msra.mxu0 0
      %1638 = vmatprep.subr.bf16.mxu0 0
      %1639 = vmatpush1.bf16.msra.mxu0 0
      %1640 = vmatprep.subr.bf16.mxu0 0
      %1641 = vmatpush1.bf16.msra.mxu0 0
      %1642 = vmatprep.subr.bf16.mxu0 0
      %1643 = vmatpush1.bf16.msra.mxu0 0
      %1644 = vmatprep.subr.bf16.mxu0 0
      %1645 = vmatpush1.bf16.msra.mxu0 0
      %1646 = vmatprep.subr.bf16.mxu0 0
      %1647 = vmatpush1.bf16.msra.mxu0 0
      %1648 = vmatprep.subr.bf16.mxu0 0
      %1649 = vmatpush1.bf16.msra.mxu0 0
      %1650 = vmatprep.subr.bf16.mxu0 0
      %1651 = vmatpush1.bf16.msra.mxu0 0
      %1652 = vmatprep.subr.bf16.mxu0 0
      %1653 = vmatpush1.bf16.msra.mxu0 0
      %1654 = vmatprep.subr.bf16.mxu0 0
      %1655 = vmatpush1.bf16.msra.mxu0 0
      %1656 = vmatprep.subr.bf16.mxu0 0
      %1657 = vmatpush1.bf16.msra.mxu0 0
      %1658 = vmatprep.subr.bf16.mxu0 0
      %1659 = vmatpush1.bf16.msra.mxu0 0
      %1660 = vmatprep.mubr.bf16.mxu0 0
      %1661 = vmatmul.mubr.bf16.gmra.mrb[0].mxu0 %v1620
      %v1662 = vpop.f32.mrb[0].mxu0
      %v1663 = vadd.f32 0.0, %v1662
      %v1664 = vpop.f32.mrb[0].mxu0
      %v1665 = vadd.f32 0.0, %v1664
      %v1666 = vpop.f32.mrb[0].mxu0
      %v1667 = vpop.f32.mrb[0].mxu0
      %1668 = vdwg.mxu0
      %v1669 = vadd.f32 %v1605, %v1663
      %v1670 = vadd.f32 %v1606, %v1665
      %1671 = vrot.lane.b32.xlu0 %v1155, 102
      %v1672 = vpop.permute.xlu0 %1671
      %1673 = vrot.lane.b32.xlu0 %v1156, 102
      %v1674 = vpop.permute.xlu0 %1673
      %v1675 = vsel %vm1006, %v1672, %v1674
      %1677 = vrot.lane.b32.xlu0 %v1155, 118
      %v1678 = vpop.permute.xlu0 %1677
      %v1680 = vsel %vm1012, %v1675, %v1678
      %v1681 = vpack.c.bf16 %v1680, %v1680
      %v1682 = vpack.c.bf16 %v1678, %v1678
      %v1684 = vsel %vm421, %v1165, 0
      %v1687 = vsel %vm425, %v1681, 0
      %v1690 = vsel %vm425, %v1682, 0
      %1692 = vmatprep.subr.bf16.mxu0 %v1690
      %1693 = vmatpush1.bf16.msra.mxu0 %v1687
      %1694 = vmatprep.subr.bf16.mxu0 0
      %1695 = vmatpush1.bf16.msra.mxu0 0
      %1696 = vmatprep.subr.bf16.mxu0 0
      %1697 = vmatpush1.bf16.msra.mxu0 0
      %1698 = vmatprep.subr.bf16.mxu0 0
      %1699 = vmatpush1.bf16.msra.mxu0 0
      %1700 = vmatprep.subr.bf16.mxu0 0
      %1701 = vmatpush1.bf16.msra.mxu0 0
      %1702 = vmatprep.subr.bf16.mxu0 0
      %1703 = vmatpush1.bf16.msra.mxu0 0
      %1704 = vmatprep.subr.bf16.mxu0 0
      %1705 = vmatpush1.bf16.msra.mxu0 0
      %1706 = vmatprep.subr.bf16.mxu0 0
      %1707 = vmatpush1.bf16.msra.mxu0 0
      %1708 = vmatprep.subr.bf16.mxu0 0
      %1709 = vmatpush1.bf16.msra.mxu0 0
      %1710 = vmatprep.subr.bf16.mxu0 0
      %1711 = vmatpush1.bf16.msra.mxu0 0
      %1712 = vmatprep.subr.bf16.mxu0 0
      %1713 = vmatpush1.bf16.msra.mxu0 0
      %1714 = vmatprep.subr.bf16.mxu0 0
      %1715 = vmatpush1.bf16.msra.mxu0 0
      %1716 = vmatprep.subr.bf16.mxu0 0
      %1717 = vmatpush1.bf16.msra.mxu0 0
      %1718 = vmatprep.subr.bf16.mxu0 0
      %1719 = vmatpush1.bf16.msra.mxu0 0
      %1720 = vmatprep.subr.bf16.mxu0 0
      %1721 = vmatpush1.bf16.msra.mxu0 0
      %1722 = vmatprep.subr.bf16.mxu0 0
      %1723 = vmatpush1.bf16.msra.mxu0 0
      %1724 = vmatprep.mubr.bf16.mxu0 0
      %1725 = vmatmul.mubr.bf16.gmra.mrb[0].mxu0 %v1684
      %v1726 = vpop.f32.mrb[0].mxu0
      %v1727 = vadd.f32 0.0, %v1726
      %v1728 = vpop.f32.mrb[0].mxu0
      %v1729 = vadd.f32 0.0, %v1728
      %v1730 = vpop.f32.mrb[0].mxu0
      %v1731 = vpop.f32.mrb[0].mxu0
      %1732 = vdwg.mxu0
      %v1733 = vadd.f32 %v1669, %v1727
      %v1734 = vadd.f32 %v1670, %v1729
      %v1735 = vld [vmem:[%s10] sm:$0xff]
      %1737 = vset.pattern.permute.xlu0 0
      %1738 = vperm.xlu0 %1737, %v1735
      %v1739 = vpop.permute.xlu0 %1738
      %v1741 = vadd.f32 %v1733, %v1739
      %v1742 = vadd.f32 %v1734, %v1739
      %v1743 = vmax.f32 %v1741, 0.0
      %v1744 = vmax.f32 %v1742, 0.0
      %v1745 = vld [vmem:[%s2] sm:$0xff]
      %v1746 = vld [vmem:[%s2 + $0x8] sm:$0xff]
      %v1747 = vld [vmem:[%s2 + $0x10] sm:$0xff]
      %v1748 = vld [vmem:[%s2 + $0x18] sm:$0xff]
      %v1749 = vld [vmem:[%s2 + $0x20] sm:$0xff]
      %v1750 = vld [vmem:[%s2 + $0x28] sm:$0xff]
      %v1751 = vld [vmem:[%s2 + $0x30] sm:$0xff]
      %v1752 = vld [vmem:[%s2 + $0x38] sm:$0xff]
      %v1753 = vld [vmem:[%s2 + $0x40] sm:$0xff]
      %v1754 = vld [vmem:[%s2 + $0x48] sm:$0xff]
      %v1755 = vld [vmem:[%s2 + $0x50] sm:$0xff]
      %v1756 = vld [vmem:[%s2 + $0x58] sm:$0xff]
      %v1757 = vld [vmem:[%s2 + $0x60] sm:$0xff]
      %v1758 = vld [vmem:[%s2 + $0x68] sm:$0xff]
      %v1759 = vld [vmem:[%s2 + $0x70] sm:$0xff]
      %v1760 = vld [vmem:[%s2 + $0x78] sm:$0xff]
      %v1761 = vld [vmem:[%s2 + $0x80] sm:$0xff]
      %v1762 = vld [vmem:[%s2 + $0x88] sm:$0xff]
      %vm1763 = vcmask 130048
      %v1765 = vsel %vm1763, %v1744, 0
      %1767 = vmatprep.subr.mxu0 0.0
      %1768 = vmatpush1.msra.mxu0 %v1745
      %1769 = vmatprep.subr.mxu0 0.0
      %1770 = vmatpush1.msra.mxu0 %v1746
      %1771 = vmatprep.subr.mxu0 0.0
      %1772 = vmatpush1.msra.mxu0 %v1747
      %1773 = vmatprep.subr.mxu0 0.0
      %1774 = vmatpush1.msra.mxu0 %v1748
      %1775 = vmatprep.subr.mxu0 0.0
      %1776 = vmatpush1.msra.mxu0 %v1749
      %1777 = vmatprep.subr.mxu0 0.0
      %1778 = vmatpush1.msra.mxu0 %v1750
      %1779 = vmatprep.subr.mxu0 0.0
      %1780 = vmatpush1.msra.mxu0 %v1751
      %1781 = vmatprep.subr.mxu0 0.0
      %1782 = vmatpush1.msra.mxu0 %v1752
      %1783 = vmatprep.subr.mxu0 0.0
      %1784 = vmatpush1.msra.mxu0 %v1753
      %1785 = vmatprep.subr.mxu0 0.0
      %1786 = vmatpush1.msra.mxu0 %v1754
      %1787 = vmatprep.subr.mxu0 0.0
      %1788 = vmatpush1.msra.mxu0 %v1755
      %1789 = vmatprep.subr.mxu0 0.0
      %1790 = vmatpush1.msra.mxu0 %v1756
      %1791 = vmatprep.subr.mxu0 0.0
      %1792 = vmatpush1.msra.mxu0 %v1757
      %1793 = vmatprep.subr.mxu0 0.0
      %1794 = vmatpush1.msra.mxu0 %v1758
      %1795 = vmatprep.subr.mxu0 0.0
      %1796 = vmatpush1.msra.mxu0 %v1759
      %1797 = vmatprep.subr.mxu0 0.0
      %1798 = vmatpush1.msra.mxu0 %v1760
      %1799 = vmatprep.subr.mxu0 0.0
      %1800 = vmatpush1.msra.mxu0 %v1761
      %1801 = vmatprep.subr.mxu0 0.0
      %1802 = vmatpush1.msra.mxu0 %v1762
      %1803 = vmatprep.subr.mxu0 0.0
      %1804 = vmatpush1.msra.mxu0 0.0
      %1805 = vmatprep.subr.mxu0 0.0
      %1806 = vmatpush1.msra.mxu0 0.0
      %1807 = vmatprep.subr.mxu0 0.0
      %1808 = vmatpush1.msra.mxu0 0.0
      %1809 = vmatprep.subr.mxu0 0.0
      %1810 = vmatpush1.msra.mxu0 0.0
      %1811 = vmatprep.subr.mxu0 0.0
      %1812 = vmatpush1.msra.mxu0 0.0
      %1813 = vmatprep.subr.mxu0 0.0
      %1814 = vmatpush1.msra.mxu0 0.0
      %1815 = vmatprep.subr.mxu0 0.0
      %1816 = vmatpush1.msra.mxu0 0.0
      %1817 = vmatprep.subr.mxu0 0.0
      %1818 = vmatpush1.msra.mxu0 0.0
      %1819 = vmatprep.subr.mxu0 0.0
      %1820 = vmatpush1.msra.mxu0 0.0
      %1821 = vmatprep.subr.mxu0 0.0
      %1822 = vmatpush1.msra.mxu0 0.0
      %1823 = vmatprep.subr.mxu0 0.0
      %1824 = vmatpush1.msra.mxu0 0.0
      %1825 = vmatprep.subr.mxu0 0.0
      %1826 = vmatpush1.msra.mxu0 0.0
      %1827 = vmatprep.subr.mxu0 0.0
      %1828 = vmatpush1.msra.mxu0 0.0
      %1829 = vmatprep.subr.mxu0 0.0
      %1830 = vmatpush1.msra.mxu0 0.0
      %1831 = vmatprep.mubr.f32.mxu0 %v1765
      %1832 = vmatmul.mubr.f32.gmra.mrb[0].mxu0 %v1743
      %v1833 = vpop.f32.mrb[0].mxu0
      %v1834 = vadd.f32 0.0, %v1833
      %v1835 = vpop.f32.mrb[0].mxu0
      %1836 = vdwg.mxu0
      %1837 = vxpose.xlu0.b32.start [1/16] %v1834, 128
      %1838 = vxpose.xlu0.b32.cont [2/16] 0.0, 128
      %1839 = vxpose.xlu0.b32.cont [3/16] 0.0, 128
      %1840 = vxpose.xlu0.b32.cont [4/16] 0.0, 128
      %1841 = vxpose.xlu0.b32.cont [5/16] 0.0, 128
      %1842 = vxpose.xlu0.b32.cont [6/16] 0.0, 128
      %1843 = vxpose.xlu0.b32.cont [7/16] 0.0, 128
      %1844 = vxpose.xlu0.b32.cont [8/16] 0.0, 128
      %1845 = vxpose.xlu0.b32.cont [9/16] 0.0, 128
      %1846 = vxpose.xlu0.b32.cont [10/16] 0.0, 128
      %1847 = vxpose.xlu0.b32.cont [11/16] 0.0, 128
      %1848 = vxpose.xlu0.b32.cont [12/16] 0.0, 128
      %1849 = vxpose.xlu0.b32.cont [13/16] 0.0, 128
      %1850 = vxpose.xlu0.b32.cont [14/16] 0.0, 128
      %1851 = vxpose.xlu0.b32.cont [15/16] 0.0, 128
      %1852 = vxpose.xlu0.b32.end [16/16] 0.0, 128
      %v1853 = vpop.trf.xlu0
      %v1854 = vpop.trf.xlu0
      %v1855 = vpop.trf.xlu0
      %v1856 = vpop.trf.xlu0
      %v1857 = vpop.trf.xlu0
      %v1858 = vpop.trf.xlu0
      %v1859 = vpop.trf.xlu0
      %v1860 = vpop.trf.xlu0
      %v1861 = vpop.trf.xlu0
      %v1862 = vpop.trf.xlu0
      %v1863 = vpop.trf.xlu0
      %v1864 = vpop.trf.xlu0
      %v1865 = vpop.trf.xlu0
      %v1866 = vpop.trf.xlu0
      %v1867 = vpop.trf.xlu0
      %v1868 = vpop.trf.xlu0
      %v1869 = vsub.f32 0.0, %v1853
      %v1870 = vmul.f32 %v1869, 1.442695
      %v1871 = vpow.pop %v1870
      %v1872 = vadd.f32 %v1871, 1.0
      %v1873 = vrcp.pop %v1872
      %v1874 = vmul.f32 3.0, %v1873
      %v1875 = vlaneseq
      %v1876 = vshrl.u32 %v1875, 7
      %v1877 = vsub.s32 0, %v1876
      %v1878 = vrot.slane %v1874, %v1877
      %1880 = vbcast.lane.b32.xlu0 %v1878, 256
      %v1881 = vpop.permute.xlu0 %1880
      %v1882 = vlaneseq
      %v1883 = vshrl.u32 %v1882, 7
      %v1884 = vsub.s32 0, %v1883
      %v1885 = vrot.slane %v1853, %v1884
      %s1887 = sor.u32 256, 4
      %1888 = vbcast.lane.b32.xlu0 %v1885, %s1887
      %v1889 = vpop.permute.xlu0 %1888
      %v1890 = vld [vmem:[%s396] sm:$0xff]
      %v1892 = vcombine.high %v1890, %v1890
      %v1894 = vsel %vm1107, %v1890, 0.0
      %v1895 = vsel %vm1107, %v1892, 0.0
      %v1896 = vadd.f32 %v1894, %v1895
      %1897 = vadd.xlane.f32.xlu0 %v1896
      %v1898 = vpop.xlane.xlu0 %1897
      %v1899 = vrcp.pop 256.0
      %v1900 = vmul.f32 %v1898, %v1899
      %v1903 = vunpack.c.l.s4 839922192
      %v1904 = vunpack.c.0.s8 %v1903
      %v1905 = vlaneseq
      %v1906 = vshrl.u32 %v1905, 7
      %v1907 = vsub.s32 %v1904, %v1906
      %v1908 = vrot.slane %v1900, %v1907
      %v1910 = vsub.f32 %v1890, %v1908
      %v1911 = vmul.f32 %v1910, %v1910
      %v1913 = vcombine.high %v1911, %v1911
      %v1915 = vsel %vm1107, %v1911, 0.0
      %v1916 = vsel %vm1107, %v1913, 0.0
      %v1917 = vadd.f32 %v1915, %v1916
      %1918 = vadd.xlane.f32.xlu0 %v1917
      %v1919 = vpop.xlane.xlu0 %1918
      %v1920 = vmul.f32 %v1919, %v1899
      %v1921 = vadd.f32 %v1920, 1e-05
      %v1922 = vrsqrt.pop %v1921
      %v1925 = vunpack.c.l.s4 839922192
      %v1926 = vunpack.c.0.s8 %v1925
      %v1927 = vlaneseq
      %v1928 = vshrl.u32 %v1927, 7
      %v1929 = vsub.s32 %v1926, %v1928
      %v1930 = vrot.slane %v1922, %v1929
      %v1932 = vmul.f32 %v1910, %v1930
      %v1935 = vunpack.c.l.s4 839922192
      %v1936 = vunpack.c.0.s8 %v1935
      %v1937 = vlaneseq
      %v1938 = vshrl.u32 %v1937, 7
      %v1939 = vsub.s32 %v1936, %v1938
      %v1940 = vrot.slane %v1881, %v1939
      %v1942 = vmul.f32 %v1932, %v1940
      %v1945 = vunpack.c.l.s4 839922192
      %v1946 = vunpack.c.0.s8 %v1945
      %v1947 = vlaneseq
      %v1948 = vshrl.u32 %v1947, 7
      %v1949 = vsub.s32 %v1946, %v1948
      %v1950 = vrot.slane %v1889, %v1949
      %v1952 = vadd.f32 %v1942, %v1950
      %1953 = vst [vmem:[%s406] sm:$0xff] %v1952
      %p1954 = scmp.lt.s32.totalorder %s22, 1
      %s1955 = scalar_select %p1954, %s22, 1
      %s1956 = smul.addr %s1955, 2
      %s1957 = smul.addr %s1956, 4
      %s1958 = scalar_lea.vmem %s11, %s1957
      // Predicated region
      $region65: #{adaptive_instance_norm.1} parent=63 // pred_check
        %p1959 = pneg %p281
      $region66: #{adaptive_instance_norm.1} parent=63 // pred_check_branch
        %1961 = sbr.rel (%p1959) target = $region68
      $region67: #{adaptive_instance_norm.1} parent=63 // pred_region
        _
      $region68: #{adaptive_instance_norm.1} parent=63 // pred_fallthru
        _
    $region64: #{adaptive_instance_norm.1} parent=5 // pred_fallthru
      _
    %p1962 = scmp.le.s32.totalorder 2, %s17
    // Predicated region
    $region69: #{adaptive_instance_norm.1} parent=5 // pred_check
      %p1963 = pneg %p1962
    $region70: #{adaptive_instance_norm.1} parent=5 // pred_check_branch
      %1965 = sbr.rel (%p1963) target = $region72
    $region71: #{adaptive_instance_norm.1} parent=5 // pred_region
      %s1966 = ssub.s32 %s17, 2
      // Predicated region
      $region73: #{adaptive_instance_norm.1} parent=71 // pred_check
        %p1967 = pneg %p287
      $region74: #{adaptive_instance_norm.1} parent=71 // pred_check_branch
        %1969 = sbr.rel (%p1967) target = $region76
      $region75: #{adaptive_instance_norm.1} parent=71 // pred_region
        %p1970 = scmp.lt.s32.totalorder %s23, 1
        %s1971 = scalar_select %p1970, %s23, 1
        %s1972 = smul.addr %s1971, 2
        %s1973 = smul.addr %s1972, 4
        %s1974 = scalar_lea.vmem %s11, %s1973
      $region76: #{adaptive_instance_norm.1} parent=71 // pred_fallthru
        _
    $region72: #{adaptive_instance_norm.1} parent=5 // pred_fallthru
      _
  $region6: #{adaptive_instance_norm.1} parent=0 // loop_footer
    %s21 = sadd.s32 1, %s17
  $region7: #{adaptive_instance_norm.1} parent=0 // loop_footer_branch
    %16 = sbr.rel target = $region3
  $region8: #{adaptive_instance_norm.1} parent=0 // loop_exit
    _

</llo_original>
